<compile_context>
chip_gen: v5e
topology: v5e:2x2
jax: 0.10.0
libtpu: 0.0.40
codegen_flags: <defaults>
</compile_context>

<pallas_src>
import functools

import jax
import jax.numpy as jnp
import numpy as np
from jax import lax
from jax.experimental import pallas as pl
from jax.experimental.pallas import tpu as pltpu

EPS = 1e-5


def decoder_block_kernel(cm, cout, x_ref, w1_ref, g1_ref, be1_ref,
                         p_ref, ud_ref, g2_ref, be2_ref,
                         w3_ref, g3_ref, be3_ref, o_ref):
    f32 = jnp.float32

    def bn_relu(y, c, g, b):
        # y: (rows, lanes) with channel id = lane % c. Batch-stat BN (one pass) + ReLU.
        rows, lanes = y.shape
        cnt = float(rows * (lanes // c))
        l0 = lax.broadcasted_iota(jnp.int32, (lanes, lanes), 0)
        l1 = lax.broadcasted_iota(jnp.int32, (lanes, lanes), 1)
        pool = jnp.where(l0 % c == l1 % c, f32(1.0 / cnt), f32(0.0))      # (lanes, lanes)
        mean = jnp.sum(jnp.dot(y, pool, preferred_element_type=f32),
                       axis=0, keepdims=True)                             # (1, lanes)
        msq = jnp.sum(jnp.dot(y * y, pool, preferred_element_type=f32),
                      axis=0, keepdims=True)
        inv = lax.rsqrt(msq - mean * mean + EPS)
        return jnp.maximum((y - mean) * inv * g + b, 0.0)

    # conv1 (1x1) as a W-block-diagonal matmul (bias cancelled by batch-stat BN).
    y1 = jnp.dot(x_ref[...], w1_ref[...], preferred_element_type=f32)     # (N*H, W*Cm)
    y1 = bn_relu(y1, cm, g1_ref[...], be1_ref[...])

    # deconv2 (k=4, s=2, p=1): row taps through batch-aware shift matrices (zero at the
    # top/bottom image border); column taps + 2x2 output-phase packing live in the
    # banded weights ud_ref[dr] for input-row offsets dr in (-1, 0, +1).
    up = jnp.dot(p_ref[0], y1, preferred_element_type=f32)   # value at input row h-1
    dn = jnp.dot(p_ref[1], y1, preferred_element_type=f32)   # value at input row h+1
    y2 = (jnp.dot(up, ud_ref[0], preferred_element_type=f32)
          + jnp.dot(y1, ud_ref[1], preferred_element_type=f32)
          + jnp.dot(dn, ud_ref[2], preferred_element_type=f32))           # (N*H, 4*W*Cm)
    y2 = bn_relu(y2, cm, g2_ref[...], be2_ref[...])

    # conv3 (1x1) as a block-diagonal matmul over the phase/column-packed lanes.
    y3 = jnp.dot(y2, w3_ref[...], preferred_element_type=f32)             # (N*H, 4*W*Cout)
    o_ref[...] = bn_relu(y3, cout, g3_ref[...], be3_ref[...])


def decoder_block_linknet(x_nchw, params):
    N, Cin, H, W = x_nchw.shape
    f32 = jnp.float32
    w1 = params["w1"].astype(f32)        # (Cin, Cm)
    wt2 = params["wt2"].astype(f32)      # (kh, kw, Cm_in, Cm_out)
    w3 = params["w3"].astype(f32)        # (Cm, Cout)
    Cm, Cout = w1.shape[1], w3.shape[1]

    # NCHW -> NHWC, then pack the W axis into lanes: rows = N*H, lanes = W*Cin.
    # TODO(synk): if the surrounding model were NHWC end-to-end this transpose disappears.
    x2 = jnp.transpose(x_nchw, (0, 2, 3, 1)).astype(f32).reshape(N * H, W * Cin)

    # 1x1 convs as block-diagonal matmuls over the packed lanes.
    w1b = jnp.kron(jnp.eye(W, dtype=f32), w1)               # (W*Cin, W*Cm)
    w3b = jnp.kron(jnp.eye(4 * W, dtype=f32), w3)           # (4*W*Cm, 4*W*Cout)

    # Batch-aware row-shift operators (zero rows at the image border / batch boundary).
    p_up = jnp.kron(jnp.eye(N, dtype=f32), jnp.eye(H, k=-1, dtype=f32))   # reads h-1
    p_dn = jnp.kron(jnp.eye(N, dtype=f32), jnp.eye(H, k=1, dtype=f32))    # reads h+1
    pshift = jnp.stack([p_up, p_dn])                        # (2, N*H, N*H)

    # ConvTranspose2d(k=4, s=2, p=1): output row 2m+pr uses input rows m+dr with kernel
    # row kh = tap[pr][dr]; identical structure for columns. Column taps and the four
    # output phases are folded into banded weights, one per row offset dr.
    tap = {0: {0: 1, -1: 3}, 1: {1: 0, 0: 2}}               # phase -> {offset: kernel idx}
    mats = []
    for dr in (-1, 0, 1):
        blocks = []
        for pr in (0, 1):
            kh = tap[pr].get(dr)
            for pc in (0, 1):
                blk = jnp.zeros((W * Cm, W * Cm), f32)
                if kh is not None:
                    for dc, kw in tap[pc].items():
                        blk = blk + jnp.kron(jnp.eye(W, k=-dc, dtype=f32), wt2[kh, kw])
                blocks.append(blk)                          # phase order p = pr*2 + pc
        mats.append(jnp.concatenate(blocks, axis=1))        # (W*Cm, 4*W*Cm)
    ud = jnp.stack(mats)                                     # (3, W*Cm, 4*W*Cm)

    # BN affine params tiled to the packed lane layout (channel id = lane % C).
    tile = lambda v, r: jnp.tile(v.astype(f32), r).reshape(1, -1)
    g1t, be1t = tile(params["g1"], W), tile(params["be1"], W)
    g2t, be2t = tile(params["g2"], 4 * W), tile(params["be2"], 4 * W)
    g3t, be3t = tile(params["g3"], 4 * W), tile(params["be3"], 4 * W)

    vmem = pl.BlockSpec(memory_space=pltpu.MemorySpace.VMEM)
    out = pl.pallas_call(
        functools.partial(decoder_block_kernel, Cm, Cout),
        out_shape=jax.ShapeDtypeStruct((N * H, 4 * W * Cout), f32),
        in_specs=[vmem] * 11,
        out_specs=vmem,
    )(x2, w1b, g1t, be1t, pshift, ud, g2t, be2t, w3b, g3t, be3t)

    # (n, h, pr, pc, q, co) -> (n, co, 2h+pr, 2q+pc): single glue transpose does both the
    # phase interleave and NHWC->NCHW.
    out6 = out.reshape(N, H, 2, 2, W, Cout)
    return jnp.transpose(out6, (0, 5, 1, 2, 4, 3)).reshape(N, Cout, 2 * H, 2 * W)


def ref_forward(x_nchw, p):
    """Pure-JAX (XLA) reference with identical math (incl. conv biases)."""
    x = jnp.transpose(x_nchw, (0, 2, 3, 1)).astype(jnp.float32)
    dn = ("NHWC", "HWIO", "NHWC")

    def bn(y, g, b):
        m = jnp.mean(y, axis=(0, 1, 2), keepdims=True)
        v = jnp.mean((y - m) ** 2, axis=(0, 1, 2), keepdims=True)
        return (y - m) * lax.rsqrt(v + EPS) * g + b

    k1 = p["w1"].reshape(1, 1, *p["w1"].shape)
    y = lax.conv_general_dilated(x, k1, (1, 1), "VALID",
                                 dimension_numbers=dn) + p["b1"]
    y = jnp.maximum(bn(y, p["g1"], p["be1"]), 0.0)

    # ConvTranspose2d(k=4, s=2, p=1) == lhs-dilated correlation with flipped kernel
    kt = p["wt2_pt"][:, :, ::-1, ::-1].transpose(2, 3, 0, 1)  # HWIO
    y = lax.conv_general_dilated(y, kt, (1, 1), [(2, 2), (2, 2)],
                                 lhs_dilation=(2, 2),
                                 dimension_numbers=dn) + p["b2"]
    y = jnp.maximum(bn(y, p["g2"], p["be2"]), 0.0)

    k3 = p["w3"].reshape(1, 1, *p["w3"].shape)
    y = lax.conv_general_dilated(y, k3, (1, 1), "VALID",
                                 dimension_numbers=dn) + p["b3"]
    y = jnp.maximum(bn(y, p["g3"], p["be3"]), 0.0)
    return jnp.transpose(y, (0, 3, 1, 2))


if __name__ == "__main__":
    key = jax.random.PRNGKey(0)
    N, Cin, H, W = 2, 16, 8, 8          # input: (2, 16, 8, 8) NCHW
    n_filters = 8
    Cm = Cin // 4
    ks = jax.random.split(key, 13)

    x = jax.random.normal(ks[0], (N, Cin, H, W), jnp.float32)

    # deterministic synthetic parameters (PyTorch-shaped, then converted)
    w1_pt = jax.random.normal(ks[1], (Cm, Cin, 1, 1), jnp.float32) * 0.2
    b1 = jax.random.normal(ks[2], (Cm,), jnp.float32) * 0.1
    wt2_pt = jax.random.normal(ks[3], (Cm, Cm, 4, 4), jnp.float32) * 0.2
    b2 = jax.random.normal(ks[4], (Cm,), jnp.float32) * 0.1
    w3_pt = jax.random.normal(ks[5], (n_filters, Cm, 1, 1), jnp.float32) * 0.2
    b3 = jax.random.normal(ks[6], (n_filters,), jnp.float32) * 0.1
    g1 = jax.random.uniform(ks[7], (Cm,), jnp.float32, 0.5, 1.5)
    be1 = jax.random.normal(ks[8], (Cm,), jnp.float32) * 0.1
    g2 = jax.random.uniform(ks[9], (Cm,), jnp.float32, 0.5, 1.5)
    be2 = jax.random.normal(ks[10], (Cm,), jnp.float32) * 0.1
    g3 = jax.random.uniform(ks[11], (n_filters,), jnp.float32, 0.5, 1.5)
    be3 = jax.random.normal(ks[12], (n_filters,), jnp.float32) * 0.1

    params = dict(
        w1=jnp.transpose(w1_pt[:, :, 0, 0], (1, 0)),      # (Cin, Cm)
        b1=b1, g1=g1, be1=be1,
        wt2=jnp.transpose(wt2_pt, (2, 3, 0, 1)),          # (kh, kw, Cm_in, Cm_out)
        wt2_pt=wt2_pt, b2=b2, g2=g2, be2=be2,
        w3=jnp.transpose(w3_pt[:, :, 0, 0], (1, 0)),      # (Cm, Cout)
        b3=b3, g3=g3, be3=be3,
    )

    out = jax.block_until_ready(decoder_block_linknet(x, params))
    ref = jax.block_until_ready(ref_forward(x, params))

    assert out.shape == (N, n_filters, 2 * H, 2 * W), out.shape
    np.testing.assert_allclose(np.asarray(out), np.asarray(ref),
                               rtol=2e-3, atol=2e-3)
    print("KERNEL_OK")
</pallas_src>

<mosaic_0001>
module attributes {stable_mosaic.version = 11 : i64} {
  func.func @decoder_block_kernel(%arg0: memref<16x128xf32, #tpu.memory_space<vmem>>, %arg1: memref<128x32xf32, #tpu.memory_space<vmem>>, %arg2: memref<1x32xf32, #tpu.memory_space<vmem>>, %arg3: memref<1x32xf32, #tpu.memory_space<vmem>>, %arg4: memref<2x16x16xf32, #tpu.memory_space<vmem>>, %arg5: memref<3x32x128xf32, #tpu.memory_space<vmem>>, %arg6: memref<1x128xf32, #tpu.memory_space<vmem>>, %arg7: memref<1x128xf32, #tpu.memory_space<vmem>>, %arg8: memref<128x256xf32, #tpu.memory_space<vmem>>, %arg9: memref<1x256xf32, #tpu.memory_space<vmem>>, %arg10: memref<1x256xf32, #tpu.memory_space<vmem>>, %arg11: memref<16x256xf32, #tpu.memory_space<vmem>>) attributes {dimension_semantics = [], scalar_prefetch = 0 : i64, scratch_operands = 0 : i64, tpu.core_type = #tpu.core_type<tc>} {
    %c0 = arith.constant 0 : index
    %c0_0 = arith.constant 0 : index
    %0 = vector.load %arg0[%c0, %c0_0] : memref<16x128xf32, #tpu.memory_space<vmem>>, vector<16x128xf32>
    %c0_1 = arith.constant 0 : index
    %c0_2 = arith.constant 0 : index
    %1 = vector.load %arg1[%c0_1, %c0_2] : memref<128x32xf32, #tpu.memory_space<vmem>>, vector<128x32xf32>
    %cst = arith.constant dense<0.000000e+00> : vector<16x32xf32>
    %2 = tpu.matmul %0, %1, %cst {dimension_numbers = #tpu.dot_dimension_numbers<[1], [0], [0], [1], [0, 0, 1, 1], [], []>} : vector<16x128xf32>, vector<128x32xf32>, vector<16x32xf32> -> vector<16x32xf32>
    %c0_3 = arith.constant 0 : index
    %c0_4 = arith.constant 0 : index
    %3 = vector.load %arg2[%c0_3, %c0_4] : memref<1x32xf32, #tpu.memory_space<vmem>>, vector<1x32xf32>
    %c0_5 = arith.constant 0 : index
    %c0_6 = arith.constant 0 : index
    %4 = vector.load %arg3[%c0_5, %c0_6] : memref<1x32xf32, #tpu.memory_space<vmem>>, vector<1x32xf32>
    %5 = tpu.iota {dimensions = array<i32: 0>} : vector<32x32xi32>
    %6 = tpu.iota {dimensions = array<i32: 1>} : vector<32x32xi32>
    %c4_i32 = arith.constant 4 : i32
    %c0_i32 = arith.constant 0 : i32
    %7 = arith.cmpi eq, %c4_i32, %c0_i32 : i32
    %c1_i32 = arith.constant 1 : i32
    %8 = arith.select %7, %c1_i32, %c4_i32 : i32
    %9 = vector.broadcast %8 : i32 to vector<32x32xi32>
    %10 = arith.remsi %5, %9 : vector<32x32xi32>
    %c0_i32_7 = arith.constant 0 : i32
    %11 = vector.broadcast %c0_i32_7 : i32 to vector<32x32xi32>
    %12 = arith.cmpi ne, %10, %11 : vector<32x32xi32>
    %c0_i32_8 = arith.constant 0 : i32
    %13 = vector.broadcast %c0_i32_8 : i32 to vector<32x32xi32>
    %14 = arith.cmpi slt, %10, %13 : vector<32x32xi32>
    %c0_i32_9 = arith.constant 0 : i32
    %15 = arith.cmpi slt, %8, %c0_i32_9 : i32
    %16 = vector.broadcast %15 : i1 to vector<32x32xi1>
    %17 = vector.broadcast %16 : vector<32x32xi1> to vector<32x32xi1>
    %18 = arith.xori %14, %17 : vector<32x32xi1>
    %19 = arith.andi %18, %12 : vector<32x32xi1>
    %20 = vector.broadcast %8 : i32 to vector<32x32xi32>
    %21 = arith.addi %10, %20 : vector<32x32xi32>
    %22 = arith.select %19, %21, %10 : vector<32x32xi1>, vector<32x32xi32>
    %c4_i32_10 = arith.constant 4 : i32
    %c0_i32_11 = arith.constant 0 : i32
    %23 = arith.cmpi eq, %c4_i32_10, %c0_i32_11 : i32
    %c1_i32_12 = arith.constant 1 : i32
    %24 = arith.select %23, %c1_i32_12, %c4_i32_10 : i32
    %25 = vector.broadcast %24 : i32 to vector<32x32xi32>
    %26 = arith.remsi %6, %25 : vector<32x32xi32>
    %c0_i32_13 = arith.constant 0 : i32
    %27 = vector.broadcast %c0_i32_13 : i32 to vector<32x32xi32>
    %28 = arith.cmpi ne, %26, %27 : vector<32x32xi32>
    %c0_i32_14 = arith.constant 0 : i32
    %29 = vector.broadcast %c0_i32_14 : i32 to vector<32x32xi32>
    %30 = arith.cmpi slt, %26, %29 : vector<32x32xi32>
    %c0_i32_15 = arith.constant 0 : i32
    %31 = arith.cmpi slt, %24, %c0_i32_15 : i32
    %32 = vector.broadcast %31 : i1 to vector<32x32xi1>
    %33 = vector.broadcast %32 : vector<32x32xi1> to vector<32x32xi1>
    %34 = arith.xori %30, %33 : vector<32x32xi1>
    %35 = arith.andi %34, %28 : vector<32x32xi1>
    %36 = vector.broadcast %24 : i32 to vector<32x32xi32>
    %37 = arith.addi %26, %36 : vector<32x32xi32>
    %38 = arith.select %35, %37, %26 : vector<32x32xi1>, vector<32x32xi32>
    %39 = arith.cmpi eq, %22, %38 : vector<32x32xi32>
    %cst_16 = arith.constant 7.812500e-03 : f32
    %cst_17 = arith.constant 0.000000e+00 : f32
    %40 = vector.broadcast %cst_16 : f32 to vector<32x32xf32>
    %41 = vector.broadcast %cst_17 : f32 to vector<32x32xf32>
    %42 = arith.select %39, %40, %41 : vector<32x32xi1>, vector<32x32xf32>
    %cst_18 = arith.constant dense<0.000000e+00> : vector<16x32xf32>
    %43 = tpu.matmul %2, %42, %cst_18 {dimension_numbers = #tpu.dot_dimension_numbers<[1], [0], [0], [1], [0, 0, 1, 1], [], []>} : vector<16x32xf32>, vector<32x32xf32>, vector<16x32xf32> -> vector<16x32xf32>
    %cst_19 = arith.constant dense<0.000000e+00> : vector<32xf32>
    %44 = vector.multi_reduction <add>, %43, %cst_19 [0] : vector<16x32xf32> to vector<32xf32>
    %45 = vector.shape_cast %44 : vector<32xf32> to vector<1x32xf32>
    %46 = arith.mulf %2, %2 : vector<16x32xf32>
    %cst_20 = arith.constant dense<0.000000e+00> : vector<16x32xf32>
    %47 = tpu.matmul %46, %42, %cst_20 {dimension_numbers = #tpu.dot_dimension_numbers<[1], [0], [0], [1], [0, 0, 1, 1], [], []>} : vector<16x32xf32>, vector<32x32xf32>, vector<16x32xf32> -> vector<16x32xf32>
    %cst_21 = arith.constant dense<0.000000e+00> : vector<32xf32>
    %48 = vector.multi_reduction <add>, %47, %cst_21 [0] : vector<16x32xf32> to vector<32xf32>
    %49 = vector.shape_cast %48 : vector<32xf32> to vector<1x32xf32>
    %50 = arith.mulf %45, %45 : vector<1x32xf32>
    %51 = arith.subf %49, %50 : vector<1x32xf32>
    %cst_22 = arith.constant 9.99999974E-6 : f32
    %52 = vector.broadcast %cst_22 : f32 to vector<1x32xf32>
    %53 = arith.addf %51, %52 : vector<1x32xf32>
    %54 = math.rsqrt %53 : vector<1x32xf32>
    %55 = vector.broadcast %45 : vector<1x32xf32> to vector<16x32xf32>
    %56 = arith.subf %2, %55 : vector<16x32xf32>
    %57 = vector.broadcast %54 : vector<1x32xf32> to vector<16x32xf32>
    %58 = arith.mulf %56, %57 : vector<16x32xf32>
    %59 = vector.broadcast %3 : vector<1x32xf32> to vector<16x32xf32>
    %60 = arith.mulf %58, %59 : vector<16x32xf32>
    %61 = vector.broadcast %4 : vector<1x32xf32> to vector<16x32xf32>
    %62 = arith.addf %60, %61 : vector<16x32xf32>
    %cst_23 = arith.constant 0.000000e+00 : f32
    %63 = vector.broadcast %cst_23 : f32 to vector<16x32xf32>
    %64 = arith.maximumf %62, %63 : vector<16x32xf32>
    %c0_24 = arith.constant 0 : index
    %c0_25 = arith.constant 0 : index
    %c0_26 = arith.constant 0 : index
    %65 = vector.load %arg4[%c0_24, %c0_25, %c0_26] : memref<2x16x16xf32, #tpu.memory_space<vmem>>, vector<1x16x16xf32>
    %66 = vector.shape_cast %65 : vector<1x16x16xf32> to vector<16x16xf32>
    %cst_27 = arith.constant dense<0.000000e+00> : vector<16x32xf32>
    %67 = tpu.matmul %66, %64, %cst_27 {dimension_numbers = #tpu.dot_dimension_numbers<[1], [0], [0], [1], [0, 0, 1, 1], [], []>} : vector<16x16xf32>, vector<16x32xf32>, vector<16x32xf32> -> vector<16x32xf32>
    %c1 = arith.constant 1 : index
    %c0_28 = arith.constant 0 : index
    %c0_29 = arith.constant 0 : index
    %68 = vector.load %arg4[%c1, %c0_28, %c0_29] : memref<2x16x16xf32, #tpu.memory_space<vmem>>, vector<1x16x16xf32>
    %69 = vector.shape_cast %68 : vector<1x16x16xf32> to vector<16x16xf32>
    %cst_30 = arith.constant dense<0.000000e+00> : vector<16x32xf32>
    %70 = tpu.matmul %69, %64, %cst_30 {dimension_numbers = #tpu.dot_dimension_numbers<[1], [0], [0], [1], [0, 0, 1, 1], [], []>} : vector<16x16xf32>, vector<16x32xf32>, vector<16x32xf32> -> vector<16x32xf32>
    %c0_31 = arith.constant 0 : index
    %c0_32 = arith.constant 0 : index
    %c0_33 = arith.constant 0 : index
    %71 = vector.load %arg5[%c0_31, %c0_32, %c0_33] : memref<3x32x128xf32, #tpu.memory_space<vmem>>, vector<1x32x128xf32>
    %72 = vector.shape_cast %71 : vector<1x32x128xf32> to vector<32x128xf32>
    %cst_34 = arith.constant dense<0.000000e+00> : vector<16x128xf32>
    %73 = tpu.matmul %67, %72, %cst_34 {dimension_numbers = #tpu.dot_dimension_numbers<[1], [0], [0], [1], [0, 0, 1, 1], [], []>} : vector<16x32xf32>, vector<32x128xf32>, vector<16x128xf32> -> vector<16x128xf32>
    %c1_35 = arith.constant 1 : index
    %c0_36 = arith.constant 0 : index
    %c0_37 = arith.constant 0 : index
    %74 = vector.load %arg5[%c1_35, %c0_36, %c0_37] : memref<3x32x128xf32, #tpu.memory_space<vmem>>, vector<1x32x128xf32>
    %75 = vector.shape_cast %74 : vector<1x32x128xf32> to vector<32x128xf32>
    %cst_38 = arith.constant dense<0.000000e+00> : vector<16x128xf32>
    %76 = tpu.matmul %64, %75, %cst_38 {dimension_numbers = #tpu.dot_dimension_numbers<[1], [0], [0], [1], [0, 0, 1, 1], [], []>} : vector<16x32xf32>, vector<32x128xf32>, vector<16x128xf32> -> vector<16x128xf32>
    %77 = arith.addf %73, %76 : vector<16x128xf32>
    %c2 = arith.constant 2 : index
    %c0_39 = arith.constant 0 : index
    %c0_40 = arith.constant 0 : index
    %78 = vector.load %arg5[%c2, %c0_39, %c0_40] : memref<3x32x128xf32, #tpu.memory_space<vmem>>, vector<1x32x128xf32>
    %79 = vector.shape_cast %78 : vector<1x32x128xf32> to vector<32x128xf32>
    %cst_41 = arith.constant dense<0.000000e+00> : vector<16x128xf32>
    %80 = tpu.matmul %70, %79, %cst_41 {dimension_numbers = #tpu.dot_dimension_numbers<[1], [0], [0], [1], [0, 0, 1, 1], [], []>} : vector<16x32xf32>, vector<32x128xf32>, vector<16x128xf32> -> vector<16x128xf32>
    %81 = arith.addf %77, %80 : vector<16x128xf32>
    %c0_42 = arith.constant 0 : index
    %c0_43 = arith.constant 0 : index
    %82 = vector.load %arg6[%c0_42, %c0_43] : memref<1x128xf32, #tpu.memory_space<vmem>>, vector<1x128xf32>
    %c0_44 = arith.constant 0 : index
    %c0_45 = arith.constant 0 : index
    %83 = vector.load %arg7[%c0_44, %c0_45] : memref<1x128xf32, #tpu.memory_space<vmem>>, vector<1x128xf32>
    %84 = tpu.iota {dimensions = array<i32: 0>} : vector<128x128xi32>
    %85 = tpu.iota {dimensions = array<i32: 1>} : vector<128x128xi32>
    %c4_i32_46 = arith.constant 4 : i32
    %c0_i32_47 = arith.constant 0 : i32
    %86 = arith.cmpi eq, %c4_i32_46, %c0_i32_47 : i32
    %c1_i32_48 = arith.constant 1 : i32
    %87 = arith.select %86, %c1_i32_48, %c4_i32_46 : i32
    %88 = vector.broadcast %87 : i32 to vector<128x128xi32>
    %89 = arith.remsi %84, %88 : vector<128x128xi32>
    %c0_i32_49 = arith.constant 0 : i32
    %90 = vector.broadcast %c0_i32_49 : i32 to vector<128x128xi32>
    %91 = arith.cmpi ne, %89, %90 : vector<128x128xi32>
    %c0_i32_50 = arith.constant 0 : i32
    %92 = vector.broadcast %c0_i32_50 : i32 to vector<128x128xi32>
    %93 = arith.cmpi slt, %89, %92 : vector<128x128xi32>
    %c0_i32_51 = arith.constant 0 : i32
    %94 = arith.cmpi slt, %87, %c0_i32_51 : i32
    %95 = vector.broadcast %94 : i1 to vector<128x128xi1>
    %96 = vector.broadcast %95 : vector<128x128xi1> to vector<128x128xi1>
    %97 = arith.xori %93, %96 : vector<128x128xi1>
    %98 = arith.andi %97, %91 : vector<128x128xi1>
    %99 = vector.broadcast %87 : i32 to vector<128x128xi32>
    %100 = arith.addi %89, %99 : vector<128x128xi32>
    %101 = arith.select %98, %100, %89 : vector<128x128xi1>, vector<128x128xi32>
    %c4_i32_52 = arith.constant 4 : i32
    %c0_i32_53 = arith.constant 0 : i32
    %102 = arith.cmpi eq, %c4_i32_52, %c0_i32_53 : i32
    %c1_i32_54 = arith.constant 1 : i32
    %103 = arith.select %102, %c1_i32_54, %c4_i32_52 : i32
    %104 = vector.broadcast %103 : i32 to vector<128x128xi32>
    %105 = arith.remsi %85, %104 : vector<128x128xi32>
    %c0_i32_55 = arith.constant 0 : i32
    %106 = vector.broadcast %c0_i32_55 : i32 to vector<128x128xi32>
    %107 = arith.cmpi ne, %105, %106 : vector<128x128xi32>
    %c0_i32_56 = arith.constant 0 : i32
    %108 = vector.broadcast %c0_i32_56 : i32 to vector<128x128xi32>
    %109 = arith.cmpi slt, %105, %108 : vector<128x128xi32>
    %c0_i32_57 = arith.constant 0 : i32
    %110 = arith.cmpi slt, %103, %c0_i32_57 : i32
    %111 = vector.broadcast %110 : i1 to vector<128x128xi1>
    %112 = vector.broadcast %111 : vector<128x128xi1> to vector<128x128xi1>
    %113 = arith.xori %109, %112 : vector<128x128xi1>
    %114 = arith.andi %113, %107 : vector<128x128xi1>
    %115 = vector.broadcast %103 : i32 to vector<128x128xi32>
    %116 = arith.addi %105, %115 : vector<128x128xi32>
    %117 = arith.select %114, %116, %105 : vector<128x128xi1>, vector<128x128xi32>
    %118 = arith.cmpi eq, %101, %117 : vector<128x128xi32>
    %cst_58 = arith.constant 0.001953125 : f32
    %cst_59 = arith.constant 0.000000e+00 : f32
    %119 = vector.broadcast %cst_58 : f32 to vector<128x128xf32>
    %120 = vector.broadcast %cst_59 : f32 to vector<128x128xf32>
    %121 = arith.select %118, %119, %120 : vector<128x128xi1>, vector<128x128xf32>
    %cst_60 = arith.constant dense<0.000000e+00> : vector<16x128xf32>
    %122 = tpu.matmul %81, %121, %cst_60 {dimension_numbers = #tpu.dot_dimension_numbers<[1], [0], [0], [1], [0, 0, 1, 1], [], []>} : vector<16x128xf32>, vector<128x128xf32>, vector<16x128xf32> -> vector<16x128xf32>
    %cst_61 = arith.constant dense<0.000000e+00> : vector<128xf32>
    %123 = vector.multi_reduction <add>, %122, %cst_61 [0] : vector<16x128xf32> to vector<128xf32>
    %124 = vector.shape_cast %123 : vector<128xf32> to vector<1x128xf32>
    %125 = arith.mulf %81, %81 : vector<16x128xf32>
    %cst_62 = arith.constant dense<0.000000e+00> : vector<16x128xf32>
    %126 = tpu.matmul %125, %121, %cst_62 {dimension_numbers = #tpu.dot_dimension_numbers<[1], [0], [0], [1], [0, 0, 1, 1], [], []>} : vector<16x128xf32>, vector<128x128xf32>, vector<16x128xf32> -> vector<16x128xf32>
    %cst_63 = arith.constant dense<0.000000e+00> : vector<128xf32>
    %127 = vector.multi_reduction <add>, %126, %cst_63 [0] : vector<16x128xf32> to vector<128xf32>
    %128 = vector.shape_cast %127 : vector<128xf32> to vector<1x128xf32>
    %129 = arith.mulf %124, %124 : vector<1x128xf32>
    %130 = arith.subf %128, %129 : vector<1x128xf32>
    %cst_64 = arith.constant 9.99999974E-6 : f32
    %131 = vector.broadcast %cst_64 : f32 to vector<1x128xf32>
    %132 = arith.addf %130, %131 : vector<1x128xf32>
    %133 = math.rsqrt %132 : vector<1x128xf32>
    %134 = vector.broadcast %124 : vector<1x128xf32> to vector<16x128xf32>
    %135 = arith.subf %81, %134 : vector<16x128xf32>
    %136 = vector.broadcast %133 : vector<1x128xf32> to vector<16x128xf32>
    %137 = arith.mulf %135, %136 : vector<16x128xf32>
    %138 = vector.broadcast %82 : vector<1x128xf32> to vector<16x128xf32>
    %139 = arith.mulf %137, %138 : vector<16x128xf32>
    %140 = vector.broadcast %83 : vector<1x128xf32> to vector<16x128xf32>
    %141 = arith.addf %139, %140 : vector<16x128xf32>
    %cst_65 = arith.constant 0.000000e+00 : f32
    %142 = vector.broadcast %cst_65 : f32 to vector<16x128xf32>
    %143 = arith.maximumf %141, %142 : vector<16x128xf32>
    %c0_66 = arith.constant 0 : index
    %c0_67 = arith.constant 0 : index
    %144 = vector.load %arg8[%c0_66, %c0_67] : memref<128x256xf32, #tpu.memory_space<vmem>>, vector<128x256xf32>
    %cst_68 = arith.constant dense<0.000000e+00> : vector<16x256xf32>
    %145 = tpu.matmul %143, %144, %cst_68 {dimension_numbers = #tpu.dot_dimension_numbers<[1], [0], [0], [1], [0, 0, 1, 1], [], []>} : vector<16x128xf32>, vector<128x256xf32>, vector<16x256xf32> -> vector<16x256xf32>
    %c0_69 = arith.constant 0 : index
    %c0_70 = arith.constant 0 : index
    %146 = vector.load %arg9[%c0_69, %c0_70] : memref<1x256xf32, #tpu.memory_space<vmem>>, vector<1x256xf32>
    %c0_71 = arith.constant 0 : index
    %c0_72 = arith.constant 0 : index
    %147 = vector.load %arg10[%c0_71, %c0_72] : memref<1x256xf32, #tpu.memory_space<vmem>>, vector<1x256xf32>
    %148 = tpu.iota {dimensions = array<i32: 0>} : vector<256x256xi32>
    %149 = tpu.iota {dimensions = array<i32: 1>} : vector<256x256xi32>
    %c8_i32 = arith.constant 8 : i32
    %c0_i32_73 = arith.constant 0 : i32
    %150 = arith.cmpi eq, %c8_i32, %c0_i32_73 : i32
    %c1_i32_74 = arith.constant 1 : i32
    %151 = arith.select %150, %c1_i32_74, %c8_i32 : i32
    %152 = vector.broadcast %151 : i32 to vector<256x256xi32>
    %153 = arith.remsi %148, %152 : vector<256x256xi32>
    %c0_i32_75 = arith.constant 0 : i32
    %154 = vector.broadcast %c0_i32_75 : i32 to vector<256x256xi32>
    %155 = arith.cmpi ne, %153, %154 : vector<256x256xi32>
    %c0_i32_76 = arith.constant 0 : i32
    %156 = vector.broadcast %c0_i32_76 : i32 to vector<256x256xi32>
    %157 = arith.cmpi slt, %153, %156 : vector<256x256xi32>
    %c0_i32_77 = arith.constant 0 : i32
    %158 = arith.cmpi slt, %151, %c0_i32_77 : i32
    %159 = vector.broadcast %158 : i1 to vector<256x256xi1>
    %160 = vector.broadcast %159 : vector<256x256xi1> to vector<256x256xi1>
    %161 = arith.xori %157, %160 : vector<256x256xi1>
    %162 = arith.andi %161, %155 : vector<256x256xi1>
    %163 = vector.broadcast %151 : i32 to vector<256x256xi32>
    %164 = arith.addi %153, %163 : vector<256x256xi32>
    %165 = arith.select %162, %164, %153 : vector<256x256xi1>, vector<256x256xi32>
    %c8_i32_78 = arith.constant 8 : i32
    %c0_i32_79 = arith.constant 0 : i32
    %166 = arith.cmpi eq, %c8_i32_78, %c0_i32_79 : i32
    %c1_i32_80 = arith.constant 1 : i32
    %167 = arith.select %166, %c1_i32_80, %c8_i32_78 : i32
    %168 = vector.broadcast %167 : i32 to vector<256x256xi32>
    %169 = arith.remsi %149, %168 : vector<256x256xi32>
    %c0_i32_81 = arith.constant 0 : i32
    %170 = vector.broadcast %c0_i32_81 : i32 to vector<256x256xi32>
    %171 = arith.cmpi ne, %169, %170 : vector<256x256xi32>
    %c0_i32_82 = arith.constant 0 : i32
    %172 = vector.broadcast %c0_i32_82 : i32 to vector<256x256xi32>
    %173 = arith.cmpi slt, %169, %172 : vector<256x256xi32>
    %c0_i32_83 = arith.constant 0 : i32
    %174 = arith.cmpi slt, %167, %c0_i32_83 : i32
    %175 = vector.broadcast %174 : i1 to vector<256x256xi1>
    %176 = vector.broadcast %175 : vector<256x256xi1> to vector<256x256xi1>
    %177 = arith.xori %173, %176 : vector<256x256xi1>
    %178 = arith.andi %177, %171 : vector<256x256xi1>
    %179 = vector.broadcast %167 : i32 to vector<256x256xi32>
    %180 = arith.addi %169, %179 : vector<256x256xi32>
    %181 = arith.select %178, %180, %169 : vector<256x256xi1>, vector<256x256xi32>
    %182 = arith.cmpi eq, %165, %181 : vector<256x256xi32>
    %cst_84 = arith.constant 0.001953125 : f32
    %cst_85 = arith.constant 0.000000e+00 : f32
    %183 = vector.broadcast %cst_84 : f32 to vector<256x256xf32>
    %184 = vector.broadcast %cst_85 : f32 to vector<256x256xf32>
    %185 = arith.select %182, %183, %184 : vector<256x256xi1>, vector<256x256xf32>
    %cst_86 = arith.constant dense<0.000000e+00> : vector<16x256xf32>
    %186 = tpu.matmul %145, %185, %cst_86 {dimension_numbers = #tpu.dot_dimension_numbers<[1], [0], [0], [1], [0, 0, 1, 1], [], []>} : vector<16x256xf32>, vector<256x256xf32>, vector<16x256xf32> -> vector<16x256xf32>
    %cst_87 = arith.constant dense<0.000000e+00> : vector<256xf32>
    %187 = vector.multi_reduction <add>, %186, %cst_87 [0] : vector<16x256xf32> to vector<256xf32>
    %188 = vector.shape_cast %187 : vector<256xf32> to vector<1x256xf32>
    %189 = arith.mulf %145, %145 : vector<16x256xf32>
    %cst_88 = arith.constant dense<0.000000e+00> : vector<16x256xf32>
    %190 = tpu.matmul %189, %185, %cst_88 {dimension_numbers = #tpu.dot_dimension_numbers<[1], [0], [0], [1], [0, 0, 1, 1], [], []>} : vector<16x256xf32>, vector<256x256xf32>, vector<16x256xf32> -> vector<16x256xf32>
    %cst_89 = arith.constant dense<0.000000e+00> : vector<256xf32>
    %191 = vector.multi_reduction <add>, %190, %cst_89 [0] : vector<16x256xf32> to vector<256xf32>
    %192 = vector.shape_cast %191 : vector<256xf32> to vector<1x256xf32>
    %193 = arith.mulf %188, %188 : vector<1x256xf32>
    %194 = arith.subf %192, %193 : vector<1x256xf32>
    %cst_90 = arith.constant 9.99999974E-6 : f32
    %195 = vector.broadcast %cst_90 : f32 to vector<1x256xf32>
    %196 = arith.addf %194, %195 : vector<1x256xf32>
    %197 = math.rsqrt %196 : vector<1x256xf32>
    %198 = vector.broadcast %188 : vector<1x256xf32> to vector<16x256xf32>
    %199 = arith.subf %145, %198 : vector<16x256xf32>
    %200 = vector.broadcast %197 : vector<1x256xf32> to vector<16x256xf32>
    %201 = arith.mulf %199, %200 : vector<16x256xf32>
    %202 = vector.broadcast %146 : vector<1x256xf32> to vector<16x256xf32>
    %203 = arith.mulf %201, %202 : vector<16x256xf32>
    %204 = vector.broadcast %147 : vector<1x256xf32> to vector<16x256xf32>
    %205 = arith.addf %203, %204 : vector<16x256xf32>
    %cst_91 = arith.constant 0.000000e+00 : f32
    %206 = vector.broadcast %cst_91 : f32 to vector<16x256xf32>
    %207 = arith.maximumf %205, %206 : vector<16x256xf32>
    %c0_92 = arith.constant 0 : index
    %c0_93 = arith.constant 0 : index
    %208 = vector.load %arg11[%c0_92, %c0_93] : memref<16x256xf32, #tpu.memory_space<vmem>>, vector<16x256xf32>
    tpu.vector_store %arg11[%c0_92, %c0_93], %207 {strides = array<i32>} : memref<16x256xf32, #tpu.memory_space<vmem>>, vector<16x256xf32>,
    return
  }
}

</mosaic_0001>

<llo_original>
// kernel: tpu_custom_call.1
$region0: #{tpu_custom_call.1}
  #allocation0 [shape = 'u32[]', space=smem, size = 0x4, offset = 0x4, fixed_abs, tag = 'smem constant byte address 0x4 - core index']
  #allocation1 [shape = 'u32[72,128]{1,0:T(1,128)}', space=vmem, size = 0x9000, scoped, tag = 'internal scratch']
  %s0 = inlined_call_operand.vmem [shape: f32[16,128], index: 0, kind: input, shape index: {}]
  %s1 = inlined_call_operand.vmem [shape: f32[128,32], index: 1, kind: input, shape index: {}]
  %s2 = inlined_call_operand.vmem [shape: f32[1,32], index: 2, kind: input, shape index: {}]
  %s3 = inlined_call_operand.vmem [shape: f32[1,32], index: 3, kind: input, shape index: {}]
  %s4 = inlined_call_operand.vmem [shape: f32[2,16,16], index: 4, kind: input, shape index: {}]
  %s5 = inlined_call_operand.vmem [shape: f32[3,32,128], index: 5, kind: input, shape index: {}]
  %s6 = inlined_call_operand.vmem [shape: f32[1,128], index: 6, kind: input, shape index: {}]
  %s7 = inlined_call_operand.vmem [shape: f32[1,128], index: 7, kind: input, shape index: {}]
  %s8 = inlined_call_operand.hbm [shape: f32[128,256], index: 8, kind: input, shape index: {}]
  %s9 = inlined_call_operand.vmem [shape: f32[1,256], index: 9, kind: input, shape index: {}]
  %s10 = inlined_call_operand.vmem [shape: f32[1,256], index: 10, kind: input, shape index: {}]
  %s11 = inlined_call_operand.hbm [shape: f32[16,256], index: 11, kind: output, shape index: {}]
  %s12 = sld [smem:[#allocation0]]
  $region58: #{tpu_custom_call.1} parent=0
    _
  %s14 = ssub.s32 1, %s12
  %s15 = scalar_select 0, %s14, %s12
  $region1: #{tpu_custom_call.1} parent=0
    #allocation2 [shape = 'u8[131072]{0}', space=vmem, size = 0x20000, scoped, tag = 'input window, operand 8, single buffered']
    #allocation3 [shape = 's32[1]{0}', space=sflag, size = 0x4, scoped, tag = 'scoped memory for tpu_custom_call.1']
    #allocation4 [shape = 's32[1]{0}', space=sflag, size = 0x4, scoped, tag = 'scoped memory for tpu_custom_call.1']
    #allocation5 [shape = 'u8[16384]{0}', space=vmem, size = 0x4000, scoped, tag = 'output window, operand 0, single buffered']
    %16 = vsyncpa [#allocation3], 0
    %17 = vsyncpa [#allocation4], 0
    // Predicated region
    $region2: #{tpu_custom_call.1} parent=1 // pred_check
      _
    $region3: #{tpu_custom_call.1} parent=1 // pred_check_branch
      %19 = sbr.rel (0) target = $region5
    $region4: #{tpu_custom_call.1} parent=1 // pred_region
      _
    $region5: #{tpu_custom_call.1} parent=1 // pred_fallthru
      _
    // Predicated region
    $region6: #{tpu_custom_call.1} parent=1 // pred_check
      _
    $region7: #{tpu_custom_call.1} parent=1 // pred_check_branch
      %21 = sbr.rel (0) target = $region9
    $region8: #{tpu_custom_call.1} parent=1 // pred_region
      _
    $region9: #{tpu_custom_call.1} parent=1 // pred_fallthru
      _
    // Predicated region
    $region10: #{tpu_custom_call.1} parent=1 // pred_check
      _
    $region11: #{tpu_custom_call.1} parent=1 // pred_check_branch
      %23 = sbr.rel (0) target = $region13
    $region12: #{tpu_custom_call.1} parent=1 // pred_region
      _
    $region13: #{tpu_custom_call.1} parent=1 // pred_fallthru
      _
    // Predicated region
    $region14: #{tpu_custom_call.1} parent=1 // pred_check
      _
    $region15: #{tpu_custom_call.1} parent=1 // pred_check_branch
      %25 = sbr.rel (0) target = $region17
    $region16: #{tpu_custom_call.1} parent=1 // pred_region
      _
    $region17: #{tpu_custom_call.1} parent=1 // pred_fallthru
      _
    // Predicated region
    $region18: #{tpu_custom_call.1} parent=1 // pred_check
      _
    $region19: #{tpu_custom_call.1} parent=1 // pred_check_branch
      %27 = sbr.rel (0) target = $region21
    $region20: #{tpu_custom_call.1} parent=1 // pred_region
      _
    $region21: #{tpu_custom_call.1} parent=1 // pred_fallthru
      _
    // Predicated region
    $region22: #{tpu_custom_call.1} parent=1 // pred_check
      _
    $region23: #{tpu_custom_call.1} parent=1 // pred_check_branch
      %29 = sbr.rel (0) target = $region25
    $region24: #{tpu_custom_call.1} parent=1 // pred_region
      _
    $region25: #{tpu_custom_call.1} parent=1 // pred_fallthru
      _
    // Predicated region
    $region26: #{tpu_custom_call.1} parent=1 // pred_check
      _
    $region27: #{tpu_custom_call.1} parent=1 // pred_check_branch
      %31 = sbr.rel (0) target = $region29
    $region28: #{tpu_custom_call.1} parent=1 // pred_region
      _
    $region29: #{tpu_custom_call.1} parent=1 // pred_fallthru
      _
    // Predicated region
    $region30: #{tpu_custom_call.1} parent=1 // pred_check
      _
    $region31: #{tpu_custom_call.1} parent=1 // pred_check_branch
      %33 = sbr.rel (0) target = $region33
    $region32: #{tpu_custom_call.1} parent=1 // pred_region
      _
    $region33: #{tpu_custom_call.1} parent=1 // pred_fallthru
      _
    // Predicated region
    $region34: #{tpu_custom_call.1} parent=1 // pred_check
      _
    $region35: #{tpu_custom_call.1} parent=1 // pred_check_branch
      %35 = sbr.rel (0) target = $region37
    $region36: #{tpu_custom_call.1} parent=1 // pred_region
      %37 = vsyncadd [#allocation3], 0
      %s38 = sshll.u32 %s8, 4
      %s39 = int_to_ptr.hbm [resolvable:$true] %s38
      %s40 = sshll.u32 [#allocation2], 4
      %s41 = int_to_ptr.vmem [resolvable:$true] %s40
      %46 = dma.hbm_to_vmem [thread:$0]  %s39, 4096, %s41, [#allocation3], 256, 256, 16
    $region37: #{tpu_custom_call.1} parent=1 // pred_fallthru
      _
    // Predicated region
    $region38: #{tpu_custom_call.1} parent=1 // pred_check
      _
    $region39: #{tpu_custom_call.1} parent=1 // pred_check_branch
      %48 = sbr.rel (0) target = $region41
    $region40: #{tpu_custom_call.1} parent=1 // pred_region
      _
    $region41: #{tpu_custom_call.1} parent=1 // pred_fallthru
      _
    // Predicated region
    $region42: #{tpu_custom_call.1} parent=1 // pred_check
      _
    $region43: #{tpu_custom_call.1} parent=1 // pred_check_branch
      %50 = sbr.rel (0) target = $region45
    $region44: #{tpu_custom_call.1} parent=1 // pred_region
      _
    $region45: #{tpu_custom_call.1} parent=1 // pred_fallthru
      _
    // Predicated region
    $region46: #{tpu_custom_call.1} parent=1 // pred_check
      _
    $region47: #{tpu_custom_call.1} parent=1 // pred_check_branch
      %52 = sbr.rel (0) target = $region49
    $region48: #{tpu_custom_call.1} parent=1 // pred_region
      %54 = dma.done [#allocation3], 4096
    $region49: #{tpu_custom_call.1} parent=1 // pred_fallthru
      _
    %v55 = vld [vmem:[%s0] sm:$0xff]
    %v56 = vld [vmem:[%s0 + $0x8] sm:$0xff]
    %v57 = vld [vmem:[%s1] sm:$0xff]
    %v58 = vld [vmem:[%s1 + $0x8] sm:$0xff]
    %v59 = vld [vmem:[%s1 + $0x10] sm:$0xff]
    %v60 = vld [vmem:[%s1 + $0x18] sm:$0xff]
    %v61 = vld [vmem:[%s1 + $0x20] sm:$0xff]
    %v62 = vld [vmem:[%s1 + $0x28] sm:$0xff]
    %v63 = vld [vmem:[%s1 + $0x30] sm:$0xff]
    %v64 = vld [vmem:[%s1 + $0x38] sm:$0xff]
    %v65 = vld [vmem:[%s1 + $0x40] sm:$0xff]
    %v66 = vld [vmem:[%s1 + $0x48] sm:$0xff]
    %v67 = vld [vmem:[%s1 + $0x50] sm:$0xff]
    %v68 = vld [vmem:[%s1 + $0x58] sm:$0xff]
    %v69 = vld [vmem:[%s1 + $0x60] sm:$0xff]
    %v70 = vld [vmem:[%s1 + $0x68] sm:$0xff]
    %v71 = vld [vmem:[%s1 + $0x70] sm:$0xff]
    %v72 = vld [vmem:[%s1 + $0x78] sm:$0xff]
    %73 = vmatpush.msra.mxu0 %v72
    %74 = vmatpush.msra.mxu0 %v71
    %75 = vmatpush.msra.mxu0 %v70
    %76 = vmatpush.msra.mxu0 %v69
    %77 = vmatpush.msra.mxu0 %v68
    %78 = vmatpush.msra.mxu0 %v67
    %79 = vmatpush.msra.mxu0 %v66
    %80 = vmatpush.msra.mxu0 %v65
    %81 = vmatpush.msra.mxu0 %v64
    %82 = vmatpush.msra.mxu0 %v63
    %83 = vmatpush.msra.mxu0 %v62
    %84 = vmatpush.msra.mxu0 %v61
    %85 = vmatpush.msra.mxu0 %v60
    %86 = vmatpush.msra.mxu0 %v59
    %87 = vmatpush.msra.mxu0 %v58
    %88 = vmatpush.msra.mxu0 %v57
    %89 = vmatmul.f32.gmra.mxu0 %v55
    %v90 = vpop.f32.mrf.mxu0
    %v91 = vadd.f32 0.0, %v90
    %92 = vmatmul.f32.gmra.mxu0 %v56
    %v93 = vpop.f32.mrf.mxu0
    %v94 = vadd.f32 0.0, %v93
    %95 = vdwg.mxu0
    %v96 = vld [vmem:[%s2] sm:$0x1]
    %v97 = vld [vmem:[%s3] sm:$0x1]
    %v98 = vlaneseq
    %v99 = vshrl.u32 %v98, 7
    %v100 = vadd.s32 %v99, 8
    %v101 = vadd.s32 %v99, 16
    %v102 = vadd.s32 %v99, 24
    %v103 = vlaneseq
    %v104 = vand.u32 %v103, 127
    %vm105 = vcmp.lt.s32.totalorder %v99, 0
    %v106 = vsub.s32 0, %v99
    %v107 = vsel %vm105, %v106, %v99
    %v108 = vshrl.u32 %v107, 2
    %v109 = vand.u32 %v107, 3
    %v110 = vsub.s32 0, %v109
    %v111 = vsel %vm105, %v110, %v109
    %vm112 = vcmp.lt.s32.totalorder %v100, 0
    %v113 = vsub.s32 0, %v100
    %v114 = vsel %vm112, %v113, %v100
    %v115 = vshrl.u32 %v114, 2
    %v116 = vand.u32 %v114, 3
    %v117 = vsub.s32 0, %v116
    %v118 = vsel %vm112, %v117, %v116
    %vm119 = vcmp.lt.s32.totalorder %v101, 0
    %v120 = vsub.s32 0, %v101
    %v121 = vsel %vm119, %v120, %v101
    %v122 = vshrl.u32 %v121, 2
    %v123 = vand.u32 %v121, 3
    %v124 = vsub.s32 0, %v123
    %v125 = vsel %vm119, %v124, %v123
    %vm126 = vcmp.lt.s32.totalorder %v102, 0
    %v127 = vsub.s32 0, %v102
    %v128 = vsel %vm126, %v127, %v102
    %v129 = vshrl.u32 %v128, 2
    %v130 = vand.u32 %v128, 3
    %v131 = vsub.s32 0, %v130
    %v132 = vsel %vm126, %v131, %v130
    %vm133 = vcmp.ne.s32.totalorder %v111, 0
    %vm134 = vcmp.ne.s32.totalorder %v118, 0
    %vm135 = vcmp.ne.s32.totalorder %v125, 0
    %vm136 = vcmp.ne.s32.totalorder %v132, 0
    %vm137 = vcmp.lt.s32.totalorder %v111, 0
    %vm138 = vcmp.lt.s32.totalorder %v118, 0
    %vm139 = vcmp.lt.s32.totalorder %v125, 0
    %vm140 = vcmp.lt.s32.totalorder %v132, 0
    %vm141 = vmand %vm137, %vm133
    %vm142 = vmand %vm138, %vm134
    %vm143 = vmand %vm139, %vm135
    %vm144 = vmand %vm140, %vm136
    %v145 = vadd.s32 %v111, 4
    %v146 = vadd.s32 %v118, 4
    %v147 = vadd.s32 %v125, 4
    %v148 = vadd.s32 %v132, 4
    %v149 = vsel %vm141, %v145, %v111
    %v150 = vsel %vm142, %v146, %v118
    %v151 = vsel %vm143, %v147, %v125
    %v152 = vsel %vm144, %v148, %v132
    %vm153 = vcmp.lt.s32.totalorder %v104, 0
    %v154 = vsub.s32 0, %v104
    %v155 = vsel %vm153, %v154, %v104
    %v156 = vshrl.u32 %v155, 2
    %v157 = vand.u32 %v155, 3
    %v158 = vsub.s32 0, %v157
    %v159 = vsel %vm153, %v158, %v157
    %vm160 = vcmp.ne.s32.totalorder %v159, 0
    %vm161 = vcmp.lt.s32.totalorder %v159, 0
    %vm162 = vmand %vm161, %vm160
    %v163 = vadd.s32 %v159, 4
    %v164 = vsel %vm162, %v163, %v159
    %vm165 = vcmp.eq.s32.totalorder %v149, %v164
    %vm166 = vcmp.eq.s32.totalorder %v150, %v164
    %vm167 = vcmp.eq.s32.totalorder %v151, %v164
    %vm168 = vcmp.eq.s32.totalorder %v152, %v164
    %v169 = vsel %vm165, 0.0078125, 0.0
    %v170 = vsel %vm166, 0.0078125, 0.0
    %v171 = vsel %vm167, 0.0078125, 0.0
    %v172 = vsel %vm168, 0.0078125, 0.0
    %vm173 = vcmask 261120
    %v175 = vsel %vm173, %v91, 0
    %v178 = vsel %vm173, %v94, 0
    %180 = vmatpush.msra.mxu0 0.0
    %181 = vmatpush.msra.mxu0 0.0
    %182 = vmatpush.msra.mxu0 0.0
    %183 = vmatpush.msra.mxu0 0.0
    %184 = vmatpush.msra.mxu0 0.0
    %185 = vmatpush.msra.mxu0 0.0
    %186 = vmatpush.msra.mxu0 0.0
    %187 = vmatpush.msra.mxu0 0.0
    %188 = vmatpush.msra.mxu0 0.0
    %189 = vmatpush.msra.mxu0 0.0
    %190 = vmatpush.msra.mxu0 0.0
    %191 = vmatpush.msra.mxu0 0.0
    %192 = vmatpush.msra.mxu0 %v172
    %193 = vmatpush.msra.mxu0 %v171
    %194 = vmatpush.msra.mxu0 %v170
    %195 = vmatpush.msra.mxu0 %v169
    %196 = vmatmul.f32.gmra.mxu0 %v175
    %v197 = vpop.f32.mrf.mxu0
    %v198 = vadd.f32 0.0, %v197
    %199 = vmatmul.f32.gmra.mxu0 %v178
    %v200 = vpop.f32.mrf.mxu0
    %v201 = vadd.f32 0.0, %v200
    %202 = vdwg.mxu0
    %v203 = vsel %vm173, %v198, 0.0
    %v204 = vsel %vm173, %v201, 0.0
    %v205 = vadd.f32 %v203, %v204
    %v206 = vrot.slane %v205, 4
    %v207 = vadd.f32 %v205, %v206
    %v208 = vrot.slane %v207, 2
    %v209 = vadd.f32 %v207, %v208
    %v210 = vrot.slane %v209, 1
    %v211 = vadd.f32 %v209, %v210
    %v212 = vmul.f32 %v91, %v91
    %v213 = vmul.f32 %v94, %v94
    %v215 = vsel %vm173, %v212, 0
    %v218 = vsel %vm173, %v213, 0
    %220 = vmatpush.msra.mxu0 0.0
    %221 = vmatpush.msra.mxu0 0.0
    %222 = vmatpush.msra.mxu0 0.0
    %223 = vmatpush.msra.mxu0 0.0
    %224 = vmatpush.msra.mxu0 0.0
    %225 = vmatpush.msra.mxu0 0.0
    %226 = vmatpush.msra.mxu0 0.0
    %227 = vmatpush.msra.mxu0 0.0
    %228 = vmatpush.msra.mxu0 0.0
    %229 = vmatpush.msra.mxu0 0.0
    %230 = vmatpush.msra.mxu0 0.0
    %231 = vmatpush.msra.mxu0 0.0
    %232 = vmatpush.msra.mxu0 %v172
    %233 = vmatpush.msra.mxu0 %v171
    %234 = vmatpush.msra.mxu0 %v170
    %235 = vmatpush.msra.mxu0 %v169
    %236 = vmatmul.f32.gmra.mxu0 %v215
    %v237 = vpop.f32.mrf.mxu0
    %v238 = vadd.f32 0.0, %v237
    %239 = vmatmul.f32.gmra.mxu0 %v218
    %v240 = vpop.f32.mrf.mxu0
    %v241 = vadd.f32 0.0, %v240
    %242 = vdwg.mxu0
    %v243 = vsel %vm173, %v238, 0.0
    %v244 = vsel %vm173, %v241, 0.0
    %v245 = vadd.f32 %v243, %v244
    %v246 = vrot.slane %v245, 4
    %v247 = vadd.f32 %v245, %v246
    %v248 = vrot.slane %v247, 2
    %v249 = vadd.f32 %v247, %v248
    %v250 = vrot.slane %v249, 1
    %v251 = vadd.f32 %v249, %v250
    %v252 = vmul.f32 %v211, %v211
    %v253 = vsub.f32 %v251, %v252
    %v254 = vadd.f32 %v253, 1e-05
    %v255 = vrsqrt.pop %v254
    %v256 = vmul.f32 %v255, %v254
    %v257 = vmul.f32 %v256, %v255
    %v258 = vmul.f32 0.5, %v257
    %v259 = vsub.f32 1.5, %v258
    %v260 = vmul.f32 %v255, %v259
    %vm261 = vweird.f32 %v254
    %vm262 = vweird.f32 %v255
    %vm263 = vmor %vm261, %vm262
    %v264 = vsel %vm263, %v255, %v260
    %v265 = vsub.f32 %v91, %v211
    %v266 = vsub.f32 %v94, %v211
    %v267 = vmul.f32 %v265, %v264
    %v268 = vmul.f32 %v266, %v264
    %v270 = vperm.slane %v96, 0
    %v272 = vmul.f32 %v267, %v270
    %v273 = vmul.f32 %v268, %v270
    %v275 = vperm.slane %v97, 0
    %v277 = vadd.f32 %v272, %v275
    %v278 = vadd.f32 %v273, %v275
    %v279 = vmax.f32 %v277, 0.0
    %v280 = vmax.f32 %v278, 0.0
    %v281 = vld [vmem:[%s4] sm:$0xff]
    %v282 = vld [vmem:[%s4 + $0x8] sm:$0xff]
    %vm283 = vcmask 130048
    %v285 = vsel %vm283, %v281, 0
    %v288 = vsel %vm283, %v282, 0
    %290 = vmatpush.msra.mxu0 0.0
    %291 = vmatpush.msra.mxu0 0.0
    %292 = vmatpush.msra.mxu0 0.0
    %293 = vmatpush.msra.mxu0 0.0
    %294 = vmatpush.msra.mxu0 0.0
    %295 = vmatpush.msra.mxu0 0.0
    %296 = vmatpush.msra.mxu0 0.0
    %297 = vmatpush.msra.mxu0 0.0
    %298 = vmatpush.msra.mxu0 0.0
    %299 = vmatpush.msra.mxu0 0.0
    %300 = vmatpush.msra.mxu0 0.0
    %301 = vmatpush.msra.mxu0 0.0
    %302 = vmatpush.msra.mxu0 0.0
    %303 = vmatpush.msra.mxu0 0.0
    %304 = vmatpush.msra.mxu0 %v280
    %305 = vmatpush.msra.mxu0 %v279
    %306 = vmatmul.f32.gmra.mxu0 %v285
    %v307 = vpop.f32.mrf.mxu0
    %v308 = vadd.f32 0.0, %v307
    %309 = vmatmul.f32.gmra.mxu0 %v288
    %v310 = vpop.f32.mrf.mxu0
    %v311 = vadd.f32 0.0, %v310
    %312 = vdwg.mxu0
    %s313 = scalar_lea.vmem %s4, 16
    %v314 = vld [vmem:[%s313] sm:$0xff]
    %v315 = vld [vmem:[%s313 + $0x8] sm:$0xff]
    %v317 = vsel %vm283, %v314, 0
    %v320 = vsel %vm283, %v315, 0
    %322 = vmatpush.msra.mxu0 0.0
    %323 = vmatpush.msra.mxu0 0.0
    %324 = vmatpush.msra.mxu0 0.0
    %325 = vmatpush.msra.mxu0 0.0
    %326 = vmatpush.msra.mxu0 0.0
    %327 = vmatpush.msra.mxu0 0.0
    %328 = vmatpush.msra.mxu0 0.0
    %329 = vmatpush.msra.mxu0 0.0
    %330 = vmatpush.msra.mxu0 0.0
    %331 = vmatpush.msra.mxu0 0.0
    %332 = vmatpush.msra.mxu0 0.0
    %333 = vmatpush.msra.mxu0 0.0
    %334 = vmatpush.msra.mxu0 0.0
    %335 = vmatpush.msra.mxu0 0.0
    %336 = vmatpush.msra.mxu0 %v280
    %337 = vmatpush.msra.mxu0 %v279
    %338 = vmatmul.f32.gmra.mxu0 %v317
    %v339 = vpop.f32.mrf.mxu0
    %v340 = vadd.f32 0.0, %v339
    %341 = vmatmul.f32.gmra.mxu0 %v320
    %v342 = vpop.f32.mrf.mxu0
    %v343 = vadd.f32 0.0, %v342
    %344 = vdwg.mxu0
    %v345 = vld [vmem:[%s5] sm:$0xff]
    %v346 = vld [vmem:[%s5 + $0x8] sm:$0xff]
    %v347 = vld [vmem:[%s5 + $0x10] sm:$0xff]
    %v348 = vld [vmem:[%s5 + $0x18] sm:$0xff]
    %s349 = scalar_lea.vmem %s5, 32
    %v350 = vld [vmem:[%s349] sm:$0xff]
    %v351 = vld [vmem:[%s349 + $0x8] sm:$0xff]
    %v352 = vld [vmem:[%s349 + $0x10] sm:$0xff]
    %v353 = vld [vmem:[%s349 + $0x18] sm:$0xff]
    %v355 = vsel %vm173, %v279, 0
    %v358 = vsel %vm173, %v280, 0
    %360 = vmatpush.msra.mxu0 0.0
    %361 = vmatpush.msra.mxu0 0.0
    %362 = vmatpush.msra.mxu0 0.0
    %363 = vmatpush.msra.mxu0 0.0
    %364 = vmatpush.msra.mxu0 0.0
    %365 = vmatpush.msra.mxu0 0.0
    %366 = vmatpush.msra.mxu0 0.0
    %367 = vmatpush.msra.mxu0 0.0
    %368 = vmatpush.msra.mxu0 0.0
    %369 = vmatpush.msra.mxu0 0.0
    %370 = vmatpush.msra.mxu0 0.0
    %371 = vmatpush.msra.mxu0 0.0
    %372 = vmatpush.msra.mxu0 %v353
    %373 = vmatpush.msra.mxu0 %v352
    %374 = vmatpush.msra.mxu0 %v351
    %375 = vmatpush.msra.mxu0 %v350
    %376 = vmatmul.f32.gmra.mxu0 %v355
    %v377 = vpop.f32.mrf.mxu0
    %v378 = vadd.f32 0.0, %v377
    %379 = vmatmul.f32.gmra.mxu0 %v358
    %v380 = vpop.f32.mrf.mxu0
    %v381 = vadd.f32 0.0, %v380
    %382 = vdwg.mxu0
    %v384 = vsel %vm173, %v308, 0
    %v387 = vsel %vm173, %v311, 0
    %389 = vmatpush.msra.mxu0 0.0
    %390 = vmatpush.msra.mxu0 0.0
    %391 = vmatpush.msra.mxu0 0.0
    %392 = vmatpush.msra.mxu0 0.0
    %393 = vmatpush.msra.mxu0 0.0
    %394 = vmatpush.msra.mxu0 0.0
    %395 = vmatpush.msra.mxu0 0.0
    %396 = vmatpush.msra.mxu0 0.0
    %397 = vmatpush.msra.mxu0 0.0
    %398 = vmatpush.msra.mxu0 0.0
    %399 = vmatpush.msra.mxu0 0.0
    %400 = vmatpush.msra.mxu0 0.0
    %401 = vmatpush.msra.mxu0 %v348
    %402 = vmatpush.msra.mxu0 %v347
    %403 = vmatpush.msra.mxu0 %v346
    %404 = vmatpush.msra.mxu0 %v345
    %405 = vmatmul.f32.gmra.mxu0 %v384
    %v406 = vpop.f32.mrf.mxu0
    %v407 = vadd.f32 %v378, %v406
    %408 = vmatmul.f32.gmra.mxu0 %v387
    %v409 = vpop.f32.mrf.mxu0
    %v410 = vadd.f32 %v381, %v409
    %411 = vdwg.mxu0
    %s412 = scalar_lea.vmem %s5, 64
    %v413 = vld [vmem:[%s412] sm:$0xff]
    %v414 = vld [vmem:[%s412 + $0x8] sm:$0xff]
    %v415 = vld [vmem:[%s412 + $0x10] sm:$0xff]
    %v416 = vld [vmem:[%s412 + $0x18] sm:$0xff]
    %v418 = vsel %vm173, %v340, 0
    %v421 = vsel %vm173, %v343, 0
    %423 = vmatpush.msra.mxu0 0.0
    %424 = vmatpush.msra.mxu0 0.0
    %425 = vmatpush.msra.mxu0 0.0
    %426 = vmatpush.msra.mxu0 0.0
    %427 = vmatpush.msra.mxu0 0.0
    %428 = vmatpush.msra.mxu0 0.0
    %429 = vmatpush.msra.mxu0 0.0
    %430 = vmatpush.msra.mxu0 0.0
    %431 = vmatpush.msra.mxu0 0.0
    %432 = vmatpush.msra.mxu0 0.0
    %433 = vmatpush.msra.mxu0 0.0
    %434 = vmatpush.msra.mxu0 0.0
    %435 = vmatpush.msra.mxu0 %v416
    %436 = vmatpush.msra.mxu0 %v415
    %437 = vmatpush.msra.mxu0 %v414
    %438 = vmatpush.msra.mxu0 %v413
    %439 = vmatmul.f32.gmra.mxu0 %v418
    %v440 = vpop.f32.mrf.mxu0
    %v441 = vadd.f32 0.0, %v440
    %442 = vmatmul.f32.gmra.mxu0 %v421
    %v443 = vpop.f32.mrf.mxu0
    %v444 = vadd.f32 0.0, %v443
    %445 = vdwg.mxu0
    %v446 = vadd.f32 %v407, %v441
    %v447 = vadd.f32 %v410, %v444
    %v448 = vld [vmem:[%s6] sm:$0x1]
    %v449 = vld [vmem:[%s7] sm:$0x1]
    %v450 = vadd.s32 %v99, 32
    %v451 = vadd.s32 %v99, 40
    %v452 = vadd.s32 %v99, 48
    %v453 = vadd.s32 %v99, 56
    %v454 = vadd.s32 %v99, 64
    %v455 = vadd.s32 %v99, 72
    %v456 = vadd.s32 %v99, 80
    %v457 = vadd.s32 %v99, 88
    %v458 = vadd.s32 %v99, 96
    %v459 = vadd.s32 %v99, 104
    %v460 = vadd.s32 %v99, 112
    %v461 = vadd.s32 %v99, 120
    %vm462 = vcmp.lt.s32.totalorder %v450, 0
    %v463 = vsub.s32 0, %v450
    %v464 = vsel %vm462, %v463, %v450
    %v465 = vshrl.u32 %v464, 2
    %v466 = vand.u32 %v464, 3
    %v467 = vsub.s32 0, %v466
    %v468 = vsel %vm462, %v467, %v466
    %vm469 = vcmp.lt.s32.totalorder %v451, 0
    %v470 = vsub.s32 0, %v451
    %v471 = vsel %vm469, %v470, %v451
    %v472 = vshrl.u32 %v471, 2
    %v473 = vand.u32 %v471, 3
    %v474 = vsub.s32 0, %v473
    %v475 = vsel %vm469, %v474, %v473
    %vm476 = vcmp.lt.s32.totalorder %v452, 0
    %v477 = vsub.s32 0, %v452
    %v478 = vsel %vm476, %v477, %v452
    %v479 = vshrl.u32 %v478, 2
    %v480 = vand.u32 %v478, 3
    %v481 = vsub.s32 0, %v480
    %v482 = vsel %vm476, %v481, %v480
    %vm483 = vcmp.lt.s32.totalorder %v453, 0
    %v484 = vsub.s32 0, %v453
    %v485 = vsel %vm483, %v484, %v453
    %v486 = vshrl.u32 %v485, 2
    %v487 = vand.u32 %v485, 3
    %v488 = vsub.s32 0, %v487
    %v489 = vsel %vm483, %v488, %v487
    %vm490 = vcmp.lt.s32.totalorder %v454, 0
    %v491 = vsub.s32 0, %v454
    %v492 = vsel %vm490, %v491, %v454
    %v493 = vshrl.u32 %v492, 2
    %v494 = vand.u32 %v492, 3
    %v495 = vsub.s32 0, %v494
    %v496 = vsel %vm490, %v495, %v494
    %vm497 = vcmp.lt.s32.totalorder %v455, 0
    %v498 = vsub.s32 0, %v455
    %v499 = vsel %vm497, %v498, %v455
    %v500 = vshrl.u32 %v499, 2
    %v501 = vand.u32 %v499, 3
    %v502 = vsub.s32 0, %v501
    %v503 = vsel %vm497, %v502, %v501
    %vm504 = vcmp.lt.s32.totalorder %v456, 0
    %v505 = vsub.s32 0, %v456
    %v506 = vsel %vm504, %v505, %v456
    %v507 = vshrl.u32 %v506, 2
    %v508 = vand.u32 %v506, 3
    %v509 = vsub.s32 0, %v508
    %v510 = vsel %vm504, %v509, %v508
    %vm511 = vcmp.lt.s32.totalorder %v457, 0
    %v512 = vsub.s32 0, %v457
    %v513 = vsel %vm511, %v512, %v457
    %v514 = vshrl.u32 %v513, 2
    %v515 = vand.u32 %v513, 3
    %v516 = vsub.s32 0, %v515
    %v517 = vsel %vm511, %v516, %v515
    %vm518 = vcmp.lt.s32.totalorder %v458, 0
    %v519 = vsub.s32 0, %v458
    %v520 = vsel %vm518, %v519, %v458
    %v521 = vshrl.u32 %v520, 2
    %v522 = vand.u32 %v520, 3
    %v523 = vsub.s32 0, %v522
    %v524 = vsel %vm518, %v523, %v522
    %vm525 = vcmp.lt.s32.totalorder %v459, 0
    %v526 = vsub.s32 0, %v459
    %v527 = vsel %vm525, %v526, %v459
    %v528 = vshrl.u32 %v527, 2
    %v529 = vand.u32 %v527, 3
    %v530 = vsub.s32 0, %v529
    %v531 = vsel %vm525, %v530, %v529
    %vm532 = vcmp.lt.s32.totalorder %v460, 0
    %v533 = vsub.s32 0, %v460
    %v534 = vsel %vm532, %v533, %v460
    %v535 = vshrl.u32 %v534, 2
    %v536 = vand.u32 %v534, 3
    %v537 = vsub.s32 0, %v536
    %v538 = vsel %vm532, %v537, %v536
    %vm539 = vcmp.lt.s32.totalorder %v461, 0
    %v540 = vsub.s32 0, %v461
    %v541 = vsel %vm539, %v540, %v461
    %v542 = vshrl.u32 %v541, 2
    %v543 = vand.u32 %v541, 3
    %v544 = vsub.s32 0, %v543
    %v545 = vsel %vm539, %v544, %v543
    %vm546 = vcmp.ne.s32.totalorder %v468, 0
    %vm547 = vcmp.ne.s32.totalorder %v475, 0
    %vm548 = vcmp.ne.s32.totalorder %v482, 0
    %vm549 = vcmp.ne.s32.totalorder %v489, 0
    %vm550 = vcmp.ne.s32.totalorder %v496, 0
    %vm551 = vcmp.ne.s32.totalorder %v503, 0
    %vm552 = vcmp.ne.s32.totalorder %v510, 0
    %vm553 = vcmp.ne.s32.totalorder %v517, 0
    %vm554 = vcmp.ne.s32.totalorder %v524, 0
    %vm555 = vcmp.ne.s32.totalorder %v531, 0
    %vm556 = vcmp.ne.s32.totalorder %v538, 0
    %vm557 = vcmp.ne.s32.totalorder %v545, 0
    %vm558 = vcmp.lt.s32.totalorder %v468, 0
    %vm559 = vcmp.lt.s32.totalorder %v475, 0
    %vm560 = vcmp.lt.s32.totalorder %v482, 0
    %vm561 = vcmp.lt.s32.totalorder %v489, 0
    %vm562 = vcmp.lt.s32.totalorder %v496, 0
    %vm563 = vcmp.lt.s32.totalorder %v503, 0
    %vm564 = vcmp.lt.s32.totalorder %v510, 0
    %vm565 = vcmp.lt.s32.totalorder %v517, 0
    %vm566 = vcmp.lt.s32.totalorder %v524, 0
    %vm567 = vcmp.lt.s32.totalorder %v531, 0
    %vm568 = vcmp.lt.s32.totalorder %v538, 0
    %vm569 = vcmp.lt.s32.totalorder %v545, 0
    %vm570 = vmand %vm558, %vm546
    %vm571 = vmand %vm559, %vm547
    %vm572 = vmand %vm560, %vm548
    %vm573 = vmand %vm561, %vm549
    %vm574 = vmand %vm562, %vm550
    %vm575 = vmand %vm563, %vm551
    %vm576 = vmand %vm564, %vm552
    %vm577 = vmand %vm565, %vm553
    %vm578 = vmand %vm566, %vm554
    %vm579 = vmand %vm567, %vm555
    %vm580 = vmand %vm568, %vm556
    %vm581 = vmand %vm569, %vm557
    %v582 = vadd.s32 %v468, 4
    %v583 = vadd.s32 %v475, 4
    %v584 = vadd.s32 %v482, 4
    %v585 = vadd.s32 %v489, 4
    %v586 = vadd.s32 %v496, 4
    %v587 = vadd.s32 %v503, 4
    %v588 = vadd.s32 %v510, 4
    %v589 = vadd.s32 %v517, 4
    %v590 = vadd.s32 %v524, 4
    %v591 = vadd.s32 %v531, 4
    %v592 = vadd.s32 %v538, 4
    %v593 = vadd.s32 %v545, 4
    %v594 = vsel %vm570, %v582, %v468
    %v595 = vsel %vm571, %v583, %v475
    %v596 = vsel %vm572, %v584, %v482
    %v597 = vsel %vm573, %v585, %v489
    %v598 = vsel %vm574, %v586, %v496
    %v599 = vsel %vm575, %v587, %v503
    %v600 = vsel %vm576, %v588, %v510
    %v601 = vsel %vm577, %v589, %v517
    %v602 = vsel %vm578, %v590, %v524
    %v603 = vsel %vm579, %v591, %v531
    %v604 = vsel %vm580, %v592, %v538
    %v605 = vsel %vm581, %v593, %v545
    %vm606 = vcmp.eq.s32.totalorder %v594, %v164
    %vm607 = vcmp.eq.s32.totalorder %v595, %v164
    %vm608 = vcmp.eq.s32.totalorder %v596, %v164
    %vm609 = vcmp.eq.s32.totalorder %v597, %v164
    %vm610 = vcmp.eq.s32.totalorder %v598, %v164
    %vm611 = vcmp.eq.s32.totalorder %v599, %v164
    %vm612 = vcmp.eq.s32.totalorder %v600, %v164
    %vm613 = vcmp.eq.s32.totalorder %v601, %v164
    %vm614 = vcmp.eq.s32.totalorder %v602, %v164
    %vm615 = vcmp.eq.s32.totalorder %v603, %v164
    %vm616 = vcmp.eq.s32.totalorder %v604, %v164
    %vm617 = vcmp.eq.s32.totalorder %v605, %v164
    %v618 = vsel %vm165, 0.001953125, 0.0
    %v619 = vsel %vm166, 0.001953125, 0.0
    %v620 = vsel %vm167, 0.001953125, 0.0
    %v621 = vsel %vm168, 0.001953125, 0.0
    %v622 = vsel %vm606, 0.001953125, 0.0
    %v623 = vsel %vm607, 0.001953125, 0.0
    %v624 = vsel %vm608, 0.001953125, 0.0
    %v625 = vsel %vm609, 0.001953125, 0.0
    %v626 = vsel %vm610, 0.001953125, 0.0
    %v627 = vsel %vm611, 0.001953125, 0.0
    %v628 = vsel %vm612, 0.001953125, 0.0
    %v629 = vsel %vm613, 0.001953125, 0.0
    %v630 = vsel %vm614, 0.001953125, 0.0
    %v631 = vsel %vm615, 0.001953125, 0.0
    %v632 = vsel %vm616, 0.001953125, 0.0
    %v633 = vsel %vm617, 0.001953125, 0.0
    %634 = vmatpush.msra.mxu0 %v633
    %635 = vmatpush.msra.mxu0 %v632
    %636 = vmatpush.msra.mxu0 %v631
    %637 = vmatpush.msra.mxu0 %v630
    %638 = vmatpush.msra.mxu0 %v629
    %639 = vmatpush.msra.mxu0 %v628
    %640 = vmatpush.msra.mxu0 %v627
    %641 = vmatpush.msra.mxu0 %v626
    %642 = vmatpush.msra.mxu0 %v625
    %643 = vmatpush.msra.mxu0 %v624
    %644 = vmatpush.msra.mxu0 %v623
    %645 = vmatpush.msra.mxu0 %v622
    %646 = vmatpush.msra.mxu0 %v621
    %647 = vmatpush.msra.mxu0 %v620
    %648 = vmatpush.msra.mxu0 %v619
    %649 = vmatpush.msra.mxu0 %v618
    %650 = vmatmul.f32.gmra.mxu0 %v446
    %v651 = vpop.f32.mrf.mxu0
    %v652 = vadd.f32 0.0, %v651
    %653 = vmatmul.f32.gmra.mxu0 %v447
    %v654 = vpop.f32.mrf.mxu0
    %v655 = vadd.f32 0.0, %v654
    %656 = vdwg.mxu0
    %v657 = vadd.f32 %v652, %v655
    %v658 = vrot.slane %v657, 4
    %v659 = vadd.f32 %v657, %v658
    %v660 = vrot.slane %v659, 2
    %v661 = vadd.f32 %v659, %v660
    %v662 = vrot.slane %v661, 1
    %v663 = vadd.f32 %v661, %v662
    %v664 = vmul.f32 %v446, %v446
    %v665 = vmul.f32 %v447, %v447
    %666 = vmatpush.msra.mxu0 %v633
    %667 = vmatpush.msra.mxu0 %v632
    %668 = vmatpush.msra.mxu0 %v631
    %669 = vmatpush.msra.mxu0 %v630
    %670 = vmatpush.msra.mxu0 %v629
    %671 = vmatpush.msra.mxu0 %v628
    %672 = vmatpush.msra.mxu0 %v627
    %673 = vmatpush.msra.mxu0 %v626
    %674 = vmatpush.msra.mxu0 %v625
    %675 = vmatpush.msra.mxu0 %v624
    %676 = vmatpush.msra.mxu0 %v623
    %677 = vmatpush.msra.mxu0 %v622
    %678 = vmatpush.msra.mxu0 %v621
    %679 = vmatpush.msra.mxu0 %v620
    %680 = vmatpush.msra.mxu0 %v619
    %681 = vmatpush.msra.mxu0 %v618
    %682 = vmatmul.f32.gmra.mxu0 %v664
    %v683 = vpop.f32.mrf.mxu0
    %v684 = vadd.f32 0.0, %v683
    %685 = vmatmul.f32.gmra.mxu0 %v665
    %v686 = vpop.f32.mrf.mxu0
    %v687 = vadd.f32 0.0, %v686
    %688 = vdwg.mxu0
    %v689 = vadd.f32 %v684, %v687
    %v690 = vrot.slane %v689, 4
    %v691 = vadd.f32 %v689, %v690
    %v692 = vrot.slane %v691, 2
    %v693 = vadd.f32 %v691, %v692
    %v694 = vrot.slane %v693, 1
    %v695 = vadd.f32 %v693, %v694
    %v696 = vmul.f32 %v663, %v663
    %v697 = vsub.f32 %v695, %v696
    %v698 = vadd.f32 %v697, 1e-05
    %v699 = vrsqrt.pop %v698
    %v700 = vmul.f32 %v699, %v698
    %v701 = vmul.f32 %v700, %v699
    %v702 = vmul.f32 0.5, %v701
    %v703 = vsub.f32 1.5, %v702
    %v704 = vmul.f32 %v699, %v703
    %vm705 = vweird.f32 %v698
    %vm706 = vweird.f32 %v699
    %vm707 = vmor %vm705, %vm706
    %v708 = vsel %vm707, %v699, %v704
    %v709 = vsub.f32 %v446, %v663
    %v710 = vsub.f32 %v447, %v663
    %v711 = vmul.f32 %v709, %v708
    %v712 = vmul.f32 %v710, %v708
    %v714 = vperm.slane %v448, 0
    %v716 = vmul.f32 %v711, %v714
    %v717 = vmul.f32 %v712, %v714
    %v719 = vperm.slane %v449, 0
    %v721 = vadd.f32 %v716, %v719
    %v722 = vadd.f32 %v717, %v719
    %v723 = vmax.f32 %v721, 0.0
    %v724 = vmax.f32 %v722, 0.0
    %v725 = vld [vmem:[#allocation2] sm:$0xff]
    %v726 = vld [vmem:[#allocation2 + $0x8] sm:$0xff]
    %v727 = vld [vmem:[#allocation2 + $0x10] sm:$0xff]
    %v728 = vld [vmem:[#allocation2 + $0x18] sm:$0xff]
    %v729 = vld [vmem:[#allocation2 + $0x20] sm:$0xff]
    %v730 = vld [vmem:[#allocation2 + $0x28] sm:$0xff]
    %v731 = vld [vmem:[#allocation2 + $0x30] sm:$0xff]
    %v732 = vld [vmem:[#allocation2 + $0x38] sm:$0xff]
    %v733 = vld [vmem:[#allocation2 + $0x40] sm:$0xff]
    %v734 = vld [vmem:[#allocation2 + $0x48] sm:$0xff]
    %v735 = vld [vmem:[#allocation2 + $0x50] sm:$0xff]
    %v736 = vld [vmem:[#allocation2 + $0x58] sm:$0xff]
    %v737 = vld [vmem:[#allocation2 + $0x60] sm:$0xff]
    %v738 = vld [vmem:[#allocation2 + $0x68] sm:$0xff]
    %v739 = vld [vmem:[#allocation2 + $0x70] sm:$0xff]
    %v740 = vld [vmem:[#allocation2 + $0x78] sm:$0xff]
    %v741 = vld [vmem:[#allocation2 + $0x80] sm:$0xff]
    %v742 = vld [vmem:[#allocation2 + $0x88] sm:$0xff]
    %v743 = vld [vmem:[#allocation2 + $0x90] sm:$0xff]
    %v744 = vld [vmem:[#allocation2 + $0x98] sm:$0xff]
    %v745 = vld [vmem:[#allocation2 + $0xa0] sm:$0xff]
    %v746 = vld [vmem:[#allocation2 + $0xa8] sm:$0xff]
    %v747 = vld [vmem:[#allocation2 + $0xb0] sm:$0xff]
    %v748 = vld [vmem:[#allocation2 + $0xb8] sm:$0xff]
    %v749 = vld [vmem:[#allocation2 + $0xc0] sm:$0xff]
    %v750 = vld [vmem:[#allocation2 + $0xc8] sm:$0xff]
    %v751 = vld [vmem:[#allocation2 + $0xd0] sm:$0xff]
    %v752 = vld [vmem:[#allocation2 + $0xd8] sm:$0xff]
    %v753 = vld [vmem:[#allocation2 + $0xe0] sm:$0xff]
    %v754 = vld [vmem:[#allocation2 + $0xe8] sm:$0xff]
    %v755 = vld [vmem:[#allocation2 + $0xf0] sm:$0xff]
    %v756 = vld [vmem:[#allocation2 + $0xf8] sm:$0xff]
    %757 = vmatpush.msra.mxu0 %v755
    %758 = vmatpush.msra.mxu0 %v753
    %759 = vmatpush.msra.mxu0 %v751
    %760 = vmatpush.msra.mxu0 %v749
    %761 = vmatpush.msra.mxu0 %v747
    %762 = vmatpush.msra.mxu0 %v745
    %763 = vmatpush.msra.mxu0 %v743
    %764 = vmatpush.msra.mxu0 %v741
    %765 = vmatpush.msra.mxu0 %v739
    %766 = vmatpush.msra.mxu0 %v737
    %767 = vmatpush.msra.mxu0 %v735
    %768 = vmatpush.msra.mxu0 %v733
    %769 = vmatpush.msra.mxu0 %v731
    %770 = vmatpush.msra.mxu0 %v729
    %771 = vmatpush.msra.mxu0 %v727
    %772 = vmatpush.msra.mxu0 %v725
    %773 = vmatmul.f32.gmra.mxu0 %v723
    %v774 = vpop.f32.mrf.mxu0
    %v775 = vadd.f32 0.0, %v774
    %776 = vmatmul.f32.gmra.mxu0 %v724
    %v777 = vpop.f32.mrf.mxu0
    %v778 = vadd.f32 0.0, %v777
    %779 = vdwg.mxu0
    %780 = vmatpush.msra.mxu0 %v756
    %781 = vmatpush.msra.mxu0 %v754
    %782 = vmatpush.msra.mxu0 %v752
    %783 = vmatpush.msra.mxu0 %v750
    %784 = vmatpush.msra.mxu0 %v748
    %785 = vmatpush.msra.mxu0 %v746
    %786 = vmatpush.msra.mxu0 %v744
    %787 = vmatpush.msra.mxu0 %v742
    %788 = vmatpush.msra.mxu0 %v740
    %789 = vmatpush.msra.mxu0 %v738
    %790 = vmatpush.msra.mxu0 %v736
    %791 = vmatpush.msra.mxu0 %v734
    %792 = vmatpush.msra.mxu0 %v732
    %793 = vmatpush.msra.mxu0 %v730
    %794 = vmatpush.msra.mxu0 %v728
    %795 = vmatpush.msra.mxu0 %v726
    %796 = vmatmul.f32.gmra.mxu0 %v723
    %v797 = vpop.f32.mrf.mxu0
    %v798 = vadd.f32 0.0, %v797
    %799 = vmatmul.f32.gmra.mxu0 %v724
    %v800 = vpop.f32.mrf.mxu0
    %v801 = vadd.f32 0.0, %v800
    %802 = vdwg.mxu0
    %v803 = vld [vmem:[%s9] sm:$0x3]
    %v804 = vld [vmem:[%s10] sm:$0x3]
    %v805 = vadd.s32 %v99, 128
    %v806 = vadd.s32 %v99, 136
    %v807 = vadd.s32 %v99, 144
    %v808 = vadd.s32 %v99, 152
    %v809 = vadd.s32 %v99, 160
    %v810 = vadd.s32 %v99, 168
    %v811 = vadd.s32 %v99, 176
    %v812 = vadd.s32 %v99, 184
    %v813 = vadd.s32 %v99, 192
    %v814 = vadd.s32 %v99, 200
    %v815 = vadd.s32 %v99, 208
    %v816 = vadd.s32 %v99, 216
    %v817 = vadd.s32 %v99, 224
    %v818 = vadd.s32 %v99, 232
    %v819 = vadd.s32 %v99, 240
    %v820 = vadd.s32 %v99, 248
    %v821 = vadd.s32 %v104, 128
    %vm822 = vcmp.lt.s32.totalorder %v99, 0
    %v823 = vsub.s32 0, %v99
    %v824 = vsel %vm822, %v823, %v99
    %v825 = vshrl.u32 %v824, 3
    %v826 = vand.u32 %v824, 7
    %v827 = vsub.s32 0, %v826
    %v828 = vsel %vm822, %v827, %v826
    %vm829 = vcmp.lt.s32.totalorder %v100, 0
    %v830 = vsub.s32 0, %v100
    %v831 = vsel %vm829, %v830, %v100
    %v832 = vshrl.u32 %v831, 3
    %v833 = vand.u32 %v831, 7
    %v834 = vsub.s32 0, %v833
    %v835 = vsel %vm829, %v834, %v833
    %vm836 = vcmp.lt.s32.totalorder %v101, 0
    %v837 = vsub.s32 0, %v101
    %v838 = vsel %vm836, %v837, %v101
    %v839 = vshrl.u32 %v838, 3
    %v840 = vand.u32 %v838, 7
    %v841 = vsub.s32 0, %v840
    %v842 = vsel %vm836, %v841, %v840
    %vm843 = vcmp.lt.s32.totalorder %v102, 0
    %v844 = vsub.s32 0, %v102
    %v845 = vsel %vm843, %v844, %v102
    %v846 = vshrl.u32 %v845, 3
    %v847 = vand.u32 %v845, 7
    %v848 = vsub.s32 0, %v847
    %v849 = vsel %vm843, %v848, %v847
    %vm850 = vcmp.lt.s32.totalorder %v450, 0
    %v851 = vsub.s32 0, %v450
    %v852 = vsel %vm850, %v851, %v450
    %v853 = vshrl.u32 %v852, 3
    %v854 = vand.u32 %v852, 7
    %v855 = vsub.s32 0, %v854
    %v856 = vsel %vm850, %v855, %v854
    %vm857 = vcmp.lt.s32.totalorder %v451, 0
    %v858 = vsub.s32 0, %v451
    %v859 = vsel %vm857, %v858, %v451
    %v860 = vshrl.u32 %v859, 3
    %v861 = vand.u32 %v859, 7
    %v862 = vsub.s32 0, %v861
    %v863 = vsel %vm857, %v862, %v861
    %vm864 = vcmp.lt.s32.totalorder %v452, 0
    %v865 = vsub.s32 0, %v452
    %v866 = vsel %vm864, %v865, %v452
    %v867 = vshrl.u32 %v866, 3
    %v868 = vand.u32 %v866, 7
    %v869 = vsub.s32 0, %v868
    %v870 = vsel %vm864, %v869, %v868
    %vm871 = vcmp.lt.s32.totalorder %v453, 0
    %v872 = vsub.s32 0, %v453
    %v873 = vsel %vm871, %v872, %v453
    %v874 = vshrl.u32 %v873, 3
    %v875 = vand.u32 %v873, 7
    %v876 = vsub.s32 0, %v875
    %v877 = vsel %vm871, %v876, %v875
    %vm878 = vcmp.lt.s32.totalorder %v454, 0
    %v879 = vsub.s32 0, %v454
    %v880 = vsel %vm878, %v879, %v454
    %v881 = vshrl.u32 %v880, 3
    %v882 = vand.u32 %v880, 7
    %v883 = vsub.s32 0, %v882
    %v884 = vsel %vm878, %v883, %v882
    %vm885 = vcmp.lt.s32.totalorder %v455, 0
    %v886 = vsub.s32 0, %v455
    %v887 = vsel %vm885, %v886, %v455
    %v888 = vshrl.u32 %v887, 3
    %v889 = vand.u32 %v887, 7
    %v890 = vsub.s32 0, %v889
    %v891 = vsel %vm885, %v890, %v889
    %vm892 = vcmp.lt.s32.totalorder %v456, 0
    %v893 = vsub.s32 0, %v456
    %v894 = vsel %vm892, %v893, %v456
    %v895 = vshrl.u32 %v894, 3
    %v896 = vand.u32 %v894, 7
    %v897 = vsub.s32 0, %v896
    %v898 = vsel %vm892, %v897, %v896
    %vm899 = vcmp.lt.s32.totalorder %v457, 0
    %v900 = vsub.s32 0, %v457
    %v901 = vsel %vm899, %v900, %v457
    %v902 = vshrl.u32 %v901, 3
    %v903 = vand.u32 %v901, 7
    %v904 = vsub.s32 0, %v903
    %v905 = vsel %vm899, %v904, %v903
    %vm906 = vcmp.lt.s32.totalorder %v458, 0
    %v907 = vsub.s32 0, %v458
    %v908 = vsel %vm906, %v907, %v458
    %v909 = vshrl.u32 %v908, 3
    %v910 = vand.u32 %v908, 7
    %v911 = vsub.s32 0, %v910
    %v912 = vsel %vm906, %v911, %v910
    %vm913 = vcmp.lt.s32.totalorder %v459, 0
    %v914 = vsub.s32 0, %v459
    %v915 = vsel %vm913, %v914, %v459
    %v916 = vshrl.u32 %v915, 3
    %v917 = vand.u32 %v915, 7
    %v918 = vsub.s32 0, %v917
    %v919 = vsel %vm913, %v918, %v917
    %vm920 = vcmp.lt.s32.totalorder %v460, 0
    %v921 = vsub.s32 0, %v460
    %v922 = vsel %vm920, %v921, %v460
    %v923 = vshrl.u32 %v922, 3
    %v924 = vand.u32 %v922, 7
    %v925 = vsub.s32 0, %v924
    %v926 = vsel %vm920, %v925, %v924
    %vm927 = vcmp.lt.s32.totalorder %v461, 0
    %v928 = vsub.s32 0, %v461
    %v929 = vsel %vm927, %v928, %v461
    %v930 = vshrl.u32 %v929, 3
    %v931 = vand.u32 %v929, 7
    %v932 = vsub.s32 0, %v931
    %v933 = vsel %vm927, %v932, %v931
    %vm934 = vcmp.lt.s32.totalorder %v805, 0
    %v935 = vsub.s32 0, %v805
    %v936 = vsel %vm934, %v935, %v805
    %v937 = vshrl.u32 %v936, 3
    %v938 = vand.u32 %v936, 7
    %v939 = vsub.s32 0, %v938
    %v940 = vsel %vm934, %v939, %v938
    %vm941 = vcmp.lt.s32.totalorder %v806, 0
    %v942 = vsub.s32 0, %v806
    %v943 = vsel %vm941, %v942, %v806
    %v944 = vshrl.u32 %v943, 3
    %v945 = vand.u32 %v943, 7
    %v946 = vsub.s32 0, %v945
    %v947 = vsel %vm941, %v946, %v945
    %vm948 = vcmp.lt.s32.totalorder %v807, 0
    %v949 = vsub.s32 0, %v807
    %v950 = vsel %vm948, %v949, %v807
    %v951 = vshrl.u32 %v950, 3
    %v952 = vand.u32 %v950, 7
    %v953 = vsub.s32 0, %v952
    %v954 = vsel %vm948, %v953, %v952
    %vm955 = vcmp.lt.s32.totalorder %v808, 0
    %v956 = vsub.s32 0, %v808
    %v957 = vsel %vm955, %v956, %v808
    %v958 = vshrl.u32 %v957, 3
    %v959 = vand.u32 %v957, 7
    %v960 = vsub.s32 0, %v959
    %v961 = vsel %vm955, %v960, %v959
    %vm962 = vcmp.lt.s32.totalorder %v809, 0
    %v963 = vsub.s32 0, %v809
    %v964 = vsel %vm962, %v963, %v809
    %v965 = vshrl.u32 %v964, 3
    %v966 = vand.u32 %v964, 7
    %v967 = vsub.s32 0, %v966
    %v968 = vsel %vm962, %v967, %v966
    %vm969 = vcmp.lt.s32.totalorder %v810, 0
    %v970 = vsub.s32 0, %v810
    %v971 = vsel %vm969, %v970, %v810
    %v972 = vshrl.u32 %v971, 3
    %v973 = vand.u32 %v971, 7
    %v974 = vsub.s32 0, %v973
    %v975 = vsel %vm969, %v974, %v973
    %vm976 = vcmp.lt.s32.totalorder %v811, 0
    %v977 = vsub.s32 0, %v811
    %v978 = vsel %vm976, %v977, %v811
    %v979 = vshrl.u32 %v978, 3
    %v980 = vand.u32 %v978, 7
    %v981 = vsub.s32 0, %v980
    %v982 = vsel %vm976, %v981, %v980
    %vm983 = vcmp.lt.s32.totalorder %v812, 0
    %v984 = vsub.s32 0, %v812
    %v985 = vsel %vm983, %v984, %v812
    %v986 = vshrl.u32 %v985, 3
    %v987 = vand.u32 %v985, 7
    %v988 = vsub.s32 0, %v987
    %v989 = vsel %vm983, %v988, %v987
    %vm990 = vcmp.lt.s32.totalorder %v813, 0
    %v991 = vsub.s32 0, %v813
    %v992 = vsel %vm990, %v991, %v813
    %v993 = vshrl.u32 %v992, 3
    %v994 = vand.u32 %v992, 7
    %v995 = vsub.s32 0, %v994
    %v996 = vsel %vm990, %v995, %v994
    %vm997 = vcmp.lt.s32.totalorder %v814, 0
    %v998 = vsub.s32 0, %v814
    %v999 = vsel %vm997, %v998, %v814
    %v1000 = vshrl.u32 %v999, 3
    %v1001 = vand.u32 %v999, 7
    %v1002 = vsub.s32 0, %v1001
    %v1003 = vsel %vm997, %v1002, %v1001
    %vm1004 = vcmp.lt.s32.totalorder %v815, 0
    %v1005 = vsub.s32 0, %v815
    %v1006 = vsel %vm1004, %v1005, %v815
    %v1007 = vshrl.u32 %v1006, 3
    %v1008 = vand.u32 %v1006, 7
    %v1009 = vsub.s32 0, %v1008
    %v1010 = vsel %vm1004, %v1009, %v1008
    %vm1011 = vcmp.lt.s32.totalorder %v816, 0
    %v1012 = vsub.s32 0, %v816
    %v1013 = vsel %vm1011, %v1012, %v816
    %v1014 = vshrl.u32 %v1013, 3
    %v1015 = vand.u32 %v1013, 7
    %v1016 = vsub.s32 0, %v1015
    %v1017 = vsel %vm1011, %v1016, %v1015
    %vm1018 = vcmp.lt.s32.totalorder %v817, 0
    %v1019 = vsub.s32 0, %v817
    %v1020 = vsel %vm1018, %v1019, %v817
    %v1021 = vshrl.u32 %v1020, 3
    %v1022 = vand.u32 %v1020, 7
    %v1023 = vsub.s32 0, %v1022
    %v1024 = vsel %vm1018, %v1023, %v1022
    %vm1025 = vcmp.lt.s32.totalorder %v818, 0
    %v1026 = vsub.s32 0, %v818
    %v1027 = vsel %vm1025, %v1026, %v818
    %v1028 = vshrl.u32 %v1027, 3
    %v1029 = vand.u32 %v1027, 7
    %v1030 = vsub.s32 0, %v1029
    %v1031 = vsel %vm1025, %v1030, %v1029
    %vm1032 = vcmp.lt.s32.totalorder %v819, 0
    %v1033 = vsub.s32 0, %v819
    %v1034 = vsel %vm1032, %v1033, %v819
    %v1035 = vshrl.u32 %v1034, 3
    %v1036 = vand.u32 %v1034, 7
    %v1037 = vsub.s32 0, %v1036
    %v1038 = vsel %vm1032, %v1037, %v1036
    %vm1039 = vcmp.lt.s32.totalorder %v820, 0
    %v1040 = vsub.s32 0, %v820
    %v1041 = vsel %vm1039, %v1040, %v820
    %v1042 = vshrl.u32 %v1041, 3
    %v1043 = vand.u32 %v1041, 7
    %v1044 = vsub.s32 0, %v1043
    %v1045 = vsel %vm1039, %v1044, %v1043
    %vm1046 = vcmp.ne.s32.totalorder %v828, 0
    %vm1047 = vcmp.ne.s32.totalorder %v835, 0
    %vm1048 = vcmp.ne.s32.totalorder %v842, 0
    %vm1049 = vcmp.ne.s32.totalorder %v849, 0
    %vm1050 = vcmp.ne.s32.totalorder %v856, 0
    %vm1051 = vcmp.ne.s32.totalorder %v863, 0
    %vm1052 = vcmp.ne.s32.totalorder %v870, 0
    %vm1053 = vcmp.ne.s32.totalorder %v877, 0
    %vm1054 = vcmp.ne.s32.totalorder %v884, 0
    %vm1055 = vcmp.ne.s32.totalorder %v891, 0
    %vm1056 = vcmp.ne.s32.totalorder %v898, 0
    %vm1057 = vcmp.ne.s32.totalorder %v905, 0
    %vm1058 = vcmp.ne.s32.totalorder %v912, 0
    %vm1059 = vcmp.ne.s32.totalorder %v919, 0
    %vm1060 = vcmp.ne.s32.totalorder %v926, 0
    %vm1061 = vcmp.ne.s32.totalorder %v933, 0
    %vm1062 = vcmp.ne.s32.totalorder %v940, 0
    %vm1063 = vcmp.ne.s32.totalorder %v947, 0
    %vm1064 = vcmp.ne.s32.totalorder %v954, 0
    %vm1065 = vcmp.ne.s32.totalorder %v961, 0
    %vm1066 = vcmp.ne.s32.totalorder %v968, 0
    %vm1067 = vcmp.ne.s32.totalorder %v975, 0
    %vm1068 = vcmp.ne.s32.totalorder %v982, 0
    %vm1069 = vcmp.ne.s32.totalorder %v989, 0
    %vm1070 = vcmp.ne.s32.totalorder %v996, 0
    %vm1071 = vcmp.ne.s32.totalorder %v1003, 0
    %vm1072 = vcmp.ne.s32.totalorder %v1010, 0
    %vm1073 = vcmp.ne.s32.totalorder %v1017, 0
    %vm1074 = vcmp.ne.s32.totalorder %v1024, 0
    %vm1075 = vcmp.ne.s32.totalorder %v1031, 0
    %vm1076 = vcmp.ne.s32.totalorder %v1038, 0
    %vm1077 = vcmp.ne.s32.totalorder %v1045, 0
    %vm1078 = vcmp.lt.s32.totalorder %v828, 0
    %vm1079 = vcmp.lt.s32.totalorder %v835, 0
    %vm1080 = vcmp.lt.s32.totalorder %v842, 0
    %vm1081 = vcmp.lt.s32.totalorder %v849, 0
    %vm1082 = vcmp.lt.s32.totalorder %v856, 0
    %vm1083 = vcmp.lt.s32.totalorder %v863, 0
    %vm1084 = vcmp.lt.s32.totalorder %v870, 0
    %vm1085 = vcmp.lt.s32.totalorder %v877, 0
    %vm1086 = vcmp.lt.s32.totalorder %v884, 0
    %vm1087 = vcmp.lt.s32.totalorder %v891, 0
    %vm1088 = vcmp.lt.s32.totalorder %v898, 0
    %vm1089 = vcmp.lt.s32.totalorder %v905, 0
    %vm1090 = vcmp.lt.s32.totalorder %v912, 0
    %vm1091 = vcmp.lt.s32.totalorder %v919, 0
    %vm1092 = vcmp.lt.s32.totalorder %v926, 0
    %vm1093 = vcmp.lt.s32.totalorder %v933, 0
    %vm1094 = vcmp.lt.s32.totalorder %v940, 0
    %vm1095 = vcmp.lt.s32.totalorder %v947, 0
    %vm1096 = vcmp.lt.s32.totalorder %v954, 0
    %vm1097 = vcmp.lt.s32.totalorder %v961, 0
    %vm1098 = vcmp.lt.s32.totalorder %v968, 0
    %vm1099 = vcmp.lt.s32.totalorder %v975, 0
    %vm1100 = vcmp.lt.s32.totalorder %v982, 0
    %vm1101 = vcmp.lt.s32.totalorder %v989, 0
    %vm1102 = vcmp.lt.s32.totalorder %v996, 0
    %vm1103 = vcmp.lt.s32.totalorder %v1003, 0
    %vm1104 = vcmp.lt.s32.totalorder %v1010, 0
    %vm1105 = vcmp.lt.s32.totalorder %v1017, 0
    %vm1106 = vcmp.lt.s32.totalorder %v1024, 0
    %vm1107 = vcmp.lt.s32.totalorder %v1031, 0
    %vm1108 = vcmp.lt.s32.totalorder %v1038, 0
    %vm1109 = vcmp.lt.s32.totalorder %v1045, 0
    %vm1110 = vmand %vm1078, %vm1046
    %vm1111 = vmand %vm1079, %vm1047
    %vm1112 = vmand %vm1080, %vm1048
    %vm1113 = vmand %vm1081, %vm1049
    %vm1114 = vmand %vm1082, %vm1050
    %vm1115 = vmand %vm1083, %vm1051
    %vm1116 = vmand %vm1084, %vm1052
    %vm1117 = vmand %vm1085, %vm1053
    %vm1118 = vmand %vm1086, %vm1054
    %vm1119 = vmand %vm1087, %vm1055
    %vm1120 = vmand %vm1088, %vm1056
    %vm1121 = vmand %vm1089, %vm1057
    %vm1122 = vmand %vm1090, %vm1058
    %vm1123 = vmand %vm1091, %vm1059
    %vm1124 = vmand %vm1092, %vm1060
    %vm1125 = vmand %vm1093, %vm1061
    %vm1126 = vmand %vm1094, %vm1062
    %vm1127 = vmand %vm1095, %vm1063
    %vm1128 = vmand %vm1096, %vm1064
    %vm1129 = vmand %vm1097, %vm1065
    %vm1130 = vmand %vm1098, %vm1066
    %vm1131 = vmand %vm1099, %vm1067
    %vm1132 = vmand %vm1100, %vm1068
    %vm1133 = vmand %vm1101, %vm1069
    %vm1134 = vmand %vm1102, %vm1070
    %vm1135 = vmand %vm1103, %vm1071
    %vm1136 = vmand %vm1104, %vm1072
    %vm1137 = vmand %vm1105, %vm1073
    %vm1138 = vmand %vm1106, %vm1074
    %vm1139 = vmand %vm1107, %vm1075
    %vm1140 = vmand %vm1108, %vm1076
    %vm1141 = vmand %vm1109, %vm1077
    %v1142 = vadd.s32 %v828, 8
    %v1143 = vadd.s32 %v835, 8
    %v1144 = vadd.s32 %v842, 8
    %v1145 = vadd.s32 %v849, 8
    %v1146 = vadd.s32 %v856, 8
    %v1147 = vadd.s32 %v863, 8
    %v1148 = vadd.s32 %v870, 8
    %v1149 = vadd.s32 %v877, 8
    %v1150 = vadd.s32 %v884, 8
    %v1151 = vadd.s32 %v891, 8
    %v1152 = vadd.s32 %v898, 8
    %v1153 = vadd.s32 %v905, 8
    %v1154 = vadd.s32 %v912, 8
    %v1155 = vadd.s32 %v919, 8
    %v1156 = vadd.s32 %v926, 8
    %v1157 = vadd.s32 %v933, 8
    %v1158 = vadd.s32 %v940, 8
    %v1159 = vadd.s32 %v947, 8
    %v1160 = vadd.s32 %v954, 8
    %v1161 = vadd.s32 %v961, 8
    %v1162 = vadd.s32 %v968, 8
    %v1163 = vadd.s32 %v975, 8
    %v1164 = vadd.s32 %v982, 8
    %v1165 = vadd.s32 %v989, 8
    %v1166 = vadd.s32 %v996, 8
    %v1167 = vadd.s32 %v1003, 8
    %v1168 = vadd.s32 %v1010, 8
    %v1169 = vadd.s32 %v1017, 8
    %v1170 = vadd.s32 %v1024, 8
    %v1171 = vadd.s32 %v1031, 8
    %v1172 = vadd.s32 %v1038, 8
    %v1173 = vadd.s32 %v1045, 8
    %v1174 = vsel %vm1110, %v1142, %v828
    %v1175 = vsel %vm1111, %v1143, %v835
    %v1176 = vsel %vm1112, %v1144, %v842
    %v1177 = vsel %vm1113, %v1145, %v849
    %v1178 = vsel %vm1114, %v1146, %v856
    %v1179 = vsel %vm1115, %v1147, %v863
    %v1180 = vsel %vm1116, %v1148, %v870
    %v1181 = vsel %vm1117, %v1149, %v877
    %v1182 = vsel %vm1118, %v1150, %v884
    %v1183 = vsel %vm1119, %v1151, %v891
    %v1184 = vsel %vm1120, %v1152, %v898
    %v1185 = vsel %vm1121, %v1153, %v905
    %v1186 = vsel %vm1122, %v1154, %v912
    %v1187 = vsel %vm1123, %v1155, %v919
    %v1188 = vsel %vm1124, %v1156, %v926
    %v1189 = vsel %vm1125, %v1157, %v933
    %v1190 = vsel %vm1126, %v1158, %v940
    %v1191 = vsel %vm1127, %v1159, %v947
    %v1192 = vsel %vm1128, %v1160, %v954
    %v1193 = vsel %vm1129, %v1161, %v961
    %v1194 = vsel %vm1130, %v1162, %v968
    %v1195 = vsel %vm1131, %v1163, %v975
    %v1196 = vsel %vm1132, %v1164, %v982
    %v1197 = vsel %vm1133, %v1165, %v989
    %v1198 = vsel %vm1134, %v1166, %v996
    %v1199 = vsel %vm1135, %v1167, %v1003
    %v1200 = vsel %vm1136, %v1168, %v1010
    %v1201 = vsel %vm1137, %v1169, %v1017
    %v1202 = vsel %vm1138, %v1170, %v1024
    %v1203 = vsel %vm1139, %v1171, %v1031
    %v1204 = vsel %vm1140, %v1172, %v1038
    %v1205 = vsel %vm1141, %v1173, %v1045
    %vm1206 = vcmp.lt.s32.totalorder %v104, 0
    %v1207 = vsub.s32 0, %v104
    %v1208 = vsel %vm1206, %v1207, %v104
    %v1209 = vshrl.u32 %v1208, 3
    %v1210 = vand.u32 %v1208, 7
    %v1211 = vsub.s32 0, %v1210
    %v1212 = vsel %vm1206, %v1211, %v1210
    %vm1213 = vcmp.lt.s32.totalorder %v821, 0
    %v1214 = vsub.s32 0, %v821
    %v1215 = vsel %vm1213, %v1214, %v821
    %v1216 = vshrl.u32 %v1215, 3
    %v1217 = vand.u32 %v1215, 7
    %v1218 = vsub.s32 0, %v1217
    %v1219 = vsel %vm1213, %v1218, %v1217
    %vm1220 = vcmp.ne.s32.totalorder %v1212, 0
    %vm1221 = vcmp.ne.s32.totalorder %v1219, 0
    %vm1222 = vcmp.lt.s32.totalorder %v1212, 0
    %vm1223 = vcmp.lt.s32.totalorder %v1219, 0
    %vm1224 = vmand %vm1222, %vm1220
    %vm1225 = vmand %vm1223, %vm1221
    %v1226 = vadd.s32 %v1212, 8
    %v1227 = vadd.s32 %v1219, 8
    %v1228 = vsel %vm1224, %v1226, %v1212
    %v1229 = vsel %vm1225, %v1227, %v1219
    %vm1230 = vcmp.eq.s32.totalorder %v1174, %v1228
    %vm1231 = vcmp.eq.s32.totalorder %v1174, %v1229
    %vm1232 = vcmp.eq.s32.totalorder %v1175, %v1228
    %vm1233 = vcmp.eq.s32.totalorder %v1175, %v1229
    %vm1234 = vcmp.eq.s32.totalorder %v1176, %v1228
    %vm1235 = vcmp.eq.s32.totalorder %v1176, %v1229
    %vm1236 = vcmp.eq.s32.totalorder %v1177, %v1228
    %vm1237 = vcmp.eq.s32.totalorder %v1177, %v1229
    %vm1238 = vcmp.eq.s32.totalorder %v1178, %v1228
    %vm1239 = vcmp.eq.s32.totalorder %v1178, %v1229
    %vm1240 = vcmp.eq.s32.totalorder %v1179, %v1228
    %vm1241 = vcmp.eq.s32.totalorder %v1179, %v1229
    %vm1242 = vcmp.eq.s32.totalorder %v1180, %v1228
    %vm1243 = vcmp.eq.s32.totalorder %v1180, %v1229
    %vm1244 = vcmp.eq.s32.totalorder %v1181, %v1228
    %vm1245 = vcmp.eq.s32.totalorder %v1181, %v1229
    %vm1246 = vcmp.eq.s32.totalorder %v1182, %v1228
    %vm1247 = vcmp.eq.s32.totalorder %v1182, %v1229
    %vm1248 = vcmp.eq.s32.totalorder %v1183, %v1228
    %vm1249 = vcmp.eq.s32.totalorder %v1183, %v1229
    %vm1250 = vcmp.eq.s32.totalorder %v1184, %v1228
    %vm1251 = vcmp.eq.s32.totalorder %v1184, %v1229
    %vm1252 = vcmp.eq.s32.totalorder %v1185, %v1228
    %vm1253 = vcmp.eq.s32.totalorder %v1185, %v1229
    %vm1254 = vcmp.eq.s32.totalorder %v1186, %v1228
    %vm1255 = vcmp.eq.s32.totalorder %v1186, %v1229
    %vm1256 = vcmp.eq.s32.totalorder %v1187, %v1228
    %vm1257 = vcmp.eq.s32.totalorder %v1187, %v1229
    %vm1258 = vcmp.eq.s32.totalorder %v1188, %v1228
    %vm1259 = vcmp.eq.s32.totalorder %v1188, %v1229
    %vm1260 = vcmp.eq.s32.totalorder %v1189, %v1228
    %vm1261 = vcmp.eq.s32.totalorder %v1189, %v1229
    %vm1262 = vcmp.eq.s32.totalorder %v1190, %v1228
    %vm1263 = vcmp.eq.s32.totalorder %v1190, %v1229
    %vm1264 = vcmp.eq.s32.totalorder %v1191, %v1228
    %vm1265 = vcmp.eq.s32.totalorder %v1191, %v1229
    %vm1266 = vcmp.eq.s32.totalorder %v1192, %v1228
    %vm1267 = vcmp.eq.s32.totalorder %v1192, %v1229
    %vm1268 = vcmp.eq.s32.totalorder %v1193, %v1228
    %vm1269 = vcmp.eq.s32.totalorder %v1193, %v1229
    %vm1270 = vcmp.eq.s32.totalorder %v1194, %v1228
    %vm1271 = vcmp.eq.s32.totalorder %v1194, %v1229
    %vm1272 = vcmp.eq.s32.totalorder %v1195, %v1228
    %vm1273 = vcmp.eq.s32.totalorder %v1195, %v1229
    %vm1274 = vcmp.eq.s32.totalorder %v1196, %v1228
    %vm1275 = vcmp.eq.s32.totalorder %v1196, %v1229
    %vm1276 = vcmp.eq.s32.totalorder %v1197, %v1228
    %vm1277 = vcmp.eq.s32.totalorder %v1197, %v1229
    %vm1278 = vcmp.eq.s32.totalorder %v1198, %v1228
    %vm1279 = vcmp.eq.s32.totalorder %v1198, %v1229
    %vm1280 = vcmp.eq.s32.totalorder %v1199, %v1228
    %vm1281 = vcmp.eq.s32.totalorder %v1199, %v1229
    %vm1282 = vcmp.eq.s32.totalorder %v1200, %v1228
    %vm1283 = vcmp.eq.s32.totalorder %v1200, %v1229
    %vm1284 = vcmp.eq.s32.totalorder %v1201, %v1228
    %vm1285 = vcmp.eq.s32.totalorder %v1201, %v1229
    %vm1286 = vcmp.eq.s32.totalorder %v1202, %v1228
    %vm1287 = vcmp.eq.s32.totalorder %v1202, %v1229
    %vm1288 = vcmp.eq.s32.totalorder %v1203, %v1228
    %vm1289 = vcmp.eq.s32.totalorder %v1203, %v1229
    %vm1290 = vcmp.eq.s32.totalorder %v1204, %v1228
    %vm1291 = vcmp.eq.s32.totalorder %v1204, %v1229
    %vm1292 = vcmp.eq.s32.totalorder %v1205, %v1228
    %vm1293 = vcmp.eq.s32.totalorder %v1205, %v1229
    %v1294 = vsel %vm1230, 0.001953125, 0.0
    %v1295 = vsel %vm1231, 0.001953125, 0.0
    %v1296 = vsel %vm1232, 0.001953125, 0.0
    %v1297 = vsel %vm1233, 0.001953125, 0.0
    %v1298 = vsel %vm1234, 0.001953125, 0.0
    %v1299 = vsel %vm1235, 0.001953125, 0.0
    %v1300 = vsel %vm1236, 0.001953125, 0.0
    %v1301 = vsel %vm1237, 0.001953125, 0.0
    %v1302 = vsel %vm1238, 0.001953125, 0.0
    %v1303 = vsel %vm1239, 0.001953125, 0.0
    %v1304 = vsel %vm1240, 0.001953125, 0.0
    %v1305 = vsel %vm1241, 0.001953125, 0.0
    %v1306 = vsel %vm1242, 0.001953125, 0.0
    %v1307 = vsel %vm1243, 0.001953125, 0.0
    %v1308 = vsel %vm1244, 0.001953125, 0.0
    %v1309 = vsel %vm1245, 0.001953125, 0.0
    %v1310 = vsel %vm1246, 0.001953125, 0.0
    %v1311 = vsel %vm1247, 0.001953125, 0.0
    %v1312 = vsel %vm1248, 0.001953125, 0.0
    %v1313 = vsel %vm1249, 0.001953125, 0.0
    %v1314 = vsel %vm1250, 0.001953125, 0.0
    %v1315 = vsel %vm1251, 0.001953125, 0.0
    %v1316 = vsel %vm1252, 0.001953125, 0.0
    %v1317 = vsel %vm1253, 0.001953125, 0.0
    %v1318 = vsel %vm1254, 0.001953125, 0.0
    %v1319 = vsel %vm1255, 0.001953125, 0.0
    %v1320 = vsel %vm1256, 0.001953125, 0.0
    %v1321 = vsel %vm1257, 0.001953125, 0.0
    %v1322 = vsel %vm1258, 0.001953125, 0.0
    %v1323 = vsel %vm1259, 0.001953125, 0.0
    %v1324 = vsel %vm1260, 0.001953125, 0.0
    %v1325 = vsel %vm1261, 0.001953125, 0.0
    %v1326 = vsel %vm1262, 0.001953125, 0.0
    %v1327 = vsel %vm1263, 0.001953125, 0.0
    %v1328 = vsel %vm1264, 0.001953125, 0.0
    %v1329 = vsel %vm1265, 0.001953125, 0.0
    %v1330 = vsel %vm1266, 0.001953125, 0.0
    %v1331 = vsel %vm1267, 0.001953125, 0.0
    %v1332 = vsel %vm1268, 0.001953125, 0.0
    %v1333 = vsel %vm1269, 0.001953125, 0.0
    %v1334 = vsel %vm1270, 0.001953125, 0.0
    %v1335 = vsel %vm1271, 0.001953125, 0.0
    %v1336 = vsel %vm1272, 0.001953125, 0.0
    %v1337 = vsel %vm1273, 0.001953125, 0.0
    %v1338 = vsel %vm1274, 0.001953125, 0.0
    %v1339 = vsel %vm1275, 0.001953125, 0.0
    %v1340 = vsel %vm1276, 0.001953125, 0.0
    %v1341 = vsel %vm1277, 0.001953125, 0.0
    %v1342 = vsel %vm1278, 0.001953125, 0.0
    %v1343 = vsel %vm1279, 0.001953125, 0.0
    %v1344 = vsel %vm1280, 0.001953125, 0.0
    %v1345 = vsel %vm1281, 0.001953125, 0.0
    %v1346 = vsel %vm1282, 0.001953125, 0.0
    %v1347 = vsel %vm1283, 0.001953125, 0.0
    %v1348 = vsel %vm1284, 0.001953125, 0.0
    %v1349 = vsel %vm1285, 0.001953125, 0.0
    %v1350 = vsel %vm1286, 0.001953125, 0.0
    %v1351 = vsel %vm1287, 0.001953125, 0.0
    %v1352 = vsel %vm1288, 0.001953125, 0.0
    %v1353 = vsel %vm1289, 0.001953125, 0.0
    %v1354 = vsel %vm1290, 0.001953125, 0.0
    %v1355 = vsel %vm1291, 0.001953125, 0.0
    %v1356 = vsel %vm1292, 0.001953125, 0.0
    %v1357 = vsel %vm1293, 0.001953125, 0.0
    %1358 = vmatpush.msra.mxu0 %v1324
    %1359 = vmatpush.msra.mxu0 %v1322
    %1360 = vmatpush.msra.mxu0 %v1320
    %1361 = vmatpush.msra.mxu0 %v1318
    %1362 = vmatpush.msra.mxu0 %v1316
    %1363 = vmatpush.msra.mxu0 %v1314
    %1364 = vmatpush.msra.mxu0 %v1312
    %1365 = vmatpush.msra.mxu0 %v1310
    %1366 = vmatpush.msra.mxu0 %v1308
    %1367 = vmatpush.msra.mxu0 %v1306
    %1368 = vmatpush.msra.mxu0 %v1304
    %1369 = vmatpush.msra.mxu0 %v1302
    %1370 = vmatpush.msra.mxu0 %v1300
    %1371 = vmatpush.msra.mxu0 %v1298
    %1372 = vmatpush.msra.mxu0 %v1296
    %1373 = vmatpush.msra.mxu0 %v1294
    %1374 = vmatmul.f32.gmra.mxu0 %v775
    %v1375 = vpop.f32.mrf.mxu0
    %v1376 = vadd.f32 0.0, %v1375
    %1377 = vmatmul.f32.gmra.mxu0 %v778
    %v1378 = vpop.f32.mrf.mxu0
    %v1379 = vadd.f32 0.0, %v1378
    %1380 = vdwg.mxu0
    %1381 = vmatpush.msra.mxu0 %v1356
    %1382 = vmatpush.msra.mxu0 %v1354
    %1383 = vmatpush.msra.mxu0 %v1352
    %1384 = vmatpush.msra.mxu0 %v1350
    %1385 = vmatpush.msra.mxu0 %v1348
    %1386 = vmatpush.msra.mxu0 %v1346
    %1387 = vmatpush.msra.mxu0 %v1344
    %1388 = vmatpush.msra.mxu0 %v1342
    %1389 = vmatpush.msra.mxu0 %v1340
    %1390 = vmatpush.msra.mxu0 %v1338
    %1391 = vmatpush.msra.mxu0 %v1336
    %1392 = vmatpush.msra.mxu0 %v1334
    %1393 = vmatpush.msra.mxu0 %v1332
    %1394 = vmatpush.msra.mxu0 %v1330
    %1395 = vmatpush.msra.mxu0 %v1328
    %1396 = vmatpush.msra.mxu0 %v1326
    %1397 = vmatmul.f32.gmra.mxu0 %v798
    %v1398 = vpop.f32.mrf.mxu0
    %v1399 = vadd.f32 %v1376, %v1398
    %1400 = vmatmul.f32.gmra.mxu0 %v801
    %v1401 = vpop.f32.mrf.mxu0
    %v1402 = vadd.f32 %v1379, %v1401
    %1403 = vdwg.mxu0
    %1404 = vmatpush.msra.mxu0 %v1325
    %1405 = vmatpush.msra.mxu0 %v1323
    %1406 = vmatpush.msra.mxu0 %v1321
    %1407 = vmatpush.msra.mxu0 %v1319
    %1408 = vmatpush.msra.mxu0 %v1317
    %1409 = vmatpush.msra.mxu0 %v1315
    %1410 = vmatpush.msra.mxu0 %v1313
    %1411 = vmatpush.msra.mxu0 %v1311
    %1412 = vmatpush.msra.mxu0 %v1309
    %1413 = vmatpush.msra.mxu0 %v1307
    %1414 = vmatpush.msra.mxu0 %v1305
    %1415 = vmatpush.msra.mxu0 %v1303
    %1416 = vmatpush.msra.mxu0 %v1301
    %1417 = vmatpush.msra.mxu0 %v1299
    %1418 = vmatpush.msra.mxu0 %v1297
    %1419 = vmatpush.msra.mxu0 %v1295
    %1420 = vmatmul.f32.gmra.mxu0 %v775
    %v1421 = vpop.f32.mrf.mxu0
    %v1422 = vadd.f32 0.0, %v1421
    %1423 = vmatmul.f32.gmra.mxu0 %v778
    %v1424 = vpop.f32.mrf.mxu0
    %v1425 = vadd.f32 0.0, %v1424
    %1426 = vdwg.mxu0
    %1427 = vmatpush.msra.mxu0 %v1357
    %1428 = vmatpush.msra.mxu0 %v1355
    %1429 = vmatpush.msra.mxu0 %v1353
    %1430 = vmatpush.msra.mxu0 %v1351
    %1431 = vmatpush.msra.mxu0 %v1349
    %1432 = vmatpush.msra.mxu0 %v1347
    %1433 = vmatpush.msra.mxu0 %v1345
    %1434 = vmatpush.msra.mxu0 %v1343
    %1435 = vmatpush.msra.mxu0 %v1341
    %1436 = vmatpush.msra.mxu0 %v1339
    %1437 = vmatpush.msra.mxu0 %v1337
    %1438 = vmatpush.msra.mxu0 %v1335
    %1439 = vmatpush.msra.mxu0 %v1333
    %1440 = vmatpush.msra.mxu0 %v1331
    %1441 = vmatpush.msra.mxu0 %v1329
    %1442 = vmatpush.msra.mxu0 %v1327
    %1443 = vmatmul.f32.gmra.mxu0 %v798
    %v1444 = vpop.f32.mrf.mxu0
    %v1445 = vadd.f32 %v1422, %v1444
    %1446 = vmatmul.f32.gmra.mxu0 %v801
    %v1447 = vpop.f32.mrf.mxu0
    %v1448 = vadd.f32 %v1425, %v1447
    %1449 = vdwg.mxu0
    %v1450 = vadd.f32 %v1399, %v1402
    %v1451 = vrot.slane %v1450, 4
    %v1452 = vadd.f32 %v1450, %v1451
    %v1453 = vrot.slane %v1452, 2
    %v1454 = vadd.f32 %v1452, %v1453
    %v1455 = vrot.slane %v1454, 1
    %v1456 = vadd.f32 %v1454, %v1455
    %v1457 = vadd.f32 %v1445, %v1448
    %v1458 = vrot.slane %v1457, 4
    %v1459 = vadd.f32 %v1457, %v1458
    %v1460 = vrot.slane %v1459, 2
    %v1461 = vadd.f32 %v1459, %v1460
    %v1462 = vrot.slane %v1461, 1
    %v1463 = vadd.f32 %v1461, %v1462
    %v1464 = vmul.f32 %v775, %v775
    %v1465 = vmul.f32 %v798, %v798
    %v1466 = vmul.f32 %v778, %v778
    %v1467 = vmul.f32 %v801, %v801
    %1468 = vmatpush.msra.mxu0 %v1324
    %1469 = vmatpush.msra.mxu0 %v1322
    %1470 = vmatpush.msra.mxu0 %v1320
    %1471 = vmatpush.msra.mxu0 %v1318
    %1472 = vmatpush.msra.mxu0 %v1316
    %1473 = vmatpush.msra.mxu0 %v1314
    %1474 = vmatpush.msra.mxu0 %v1312
    %1475 = vmatpush.msra.mxu0 %v1310
    %1476 = vmatpush.msra.mxu0 %v1308
    %1477 = vmatpush.msra.mxu0 %v1306
    %1478 = vmatpush.msra.mxu0 %v1304
    %1479 = vmatpush.msra.mxu0 %v1302
    %1480 = vmatpush.msra.mxu0 %v1300
    %1481 = vmatpush.msra.mxu0 %v1298
    %1482 = vmatpush.msra.mxu0 %v1296
    %1483 = vmatpush.msra.mxu0 %v1294
    %1484 = vmatmul.f32.gmra.mxu0 %v1464
    %v1485 = vpop.f32.mrf.mxu0
    %v1486 = vadd.f32 0.0, %v1485
    %1487 = vmatmul.f32.gmra.mxu0 %v1466
    %v1488 = vpop.f32.mrf.mxu0
    %v1489 = vadd.f32 0.0, %v1488
    %1490 = vdwg.mxu0
    %1491 = vmatpush.msra.mxu0 %v1356
    %1492 = vmatpush.msra.mxu0 %v1354
    %1493 = vmatpush.msra.mxu0 %v1352
    %1494 = vmatpush.msra.mxu0 %v1350
    %1495 = vmatpush.msra.mxu0 %v1348
    %1496 = vmatpush.msra.mxu0 %v1346
    %1497 = vmatpush.msra.mxu0 %v1344
    %1498 = vmatpush.msra.mxu0 %v1342
    %1499 = vmatpush.msra.mxu0 %v1340
    %1500 = vmatpush.msra.mxu0 %v1338
    %1501 = vmatpush.msra.mxu0 %v1336
    %1502 = vmatpush.msra.mxu0 %v1334
    %1503 = vmatpush.msra.mxu0 %v1332
    %1504 = vmatpush.msra.mxu0 %v1330
    %1505 = vmatpush.msra.mxu0 %v1328
    %1506 = vmatpush.msra.mxu0 %v1326
    %1507 = vmatmul.f32.gmra.mxu0 %v1465
    %v1508 = vpop.f32.mrf.mxu0
    %v1509 = vadd.f32 %v1486, %v1508
    %1510 = vmatmul.f32.gmra.mxu0 %v1467
    %v1511 = vpop.f32.mrf.mxu0
    %v1512 = vadd.f32 %v1489, %v1511
    %1513 = vdwg.mxu0
    %1514 = vmatpush.msra.mxu0 %v1325
    %1515 = vmatpush.msra.mxu0 %v1323
    %1516 = vmatpush.msra.mxu0 %v1321
    %1517 = vmatpush.msra.mxu0 %v1319
    %1518 = vmatpush.msra.mxu0 %v1317
    %1519 = vmatpush.msra.mxu0 %v1315
    %1520 = vmatpush.msra.mxu0 %v1313
    %1521 = vmatpush.msra.mxu0 %v1311
    %1522 = vmatpush.msra.mxu0 %v1309
    %1523 = vmatpush.msra.mxu0 %v1307
    %1524 = vmatpush.msra.mxu0 %v1305
    %1525 = vmatpush.msra.mxu0 %v1303
    %1526 = vmatpush.msra.mxu0 %v1301
    %1527 = vmatpush.msra.mxu0 %v1299
    %1528 = vmatpush.msra.mxu0 %v1297
    %1529 = vmatpush.msra.mxu0 %v1295
    %1530 = vmatmul.f32.gmra.mxu0 %v1464
    %v1531 = vpop.f32.mrf.mxu0
    %v1532 = vadd.f32 0.0, %v1531
    %1533 = vmatmul.f32.gmra.mxu0 %v1466
    %v1534 = vpop.f32.mrf.mxu0
    %v1535 = vadd.f32 0.0, %v1534
    %1536 = vdwg.mxu0
    %1537 = vmatpush.msra.mxu0 %v1357
    %1538 = vmatpush.msra.mxu0 %v1355
    %1539 = vmatpush.msra.mxu0 %v1353
    %1540 = vmatpush.msra.mxu0 %v1351
    %1541 = vmatpush.msra.mxu0 %v1349
    %1542 = vmatpush.msra.mxu0 %v1347
    %1543 = vmatpush.msra.mxu0 %v1345
    %1544 = vmatpush.msra.mxu0 %v1343
    %1545 = vmatpush.msra.mxu0 %v1341
    %1546 = vmatpush.msra.mxu0 %v1339
    %1547 = vmatpush.msra.mxu0 %v1337
    %1548 = vmatpush.msra.mxu0 %v1335
    %1549 = vmatpush.msra.mxu0 %v1333
    %1550 = vmatpush.msra.mxu0 %v1331
    %1551 = vmatpush.msra.mxu0 %v1329
    %1552 = vmatpush.msra.mxu0 %v1327
    %1553 = vmatmul.f32.gmra.mxu0 %v1465
    %v1554 = vpop.f32.mrf.mxu0
    %v1555 = vadd.f32 %v1532, %v1554
    %1556 = vmatmul.f32.gmra.mxu0 %v1467
    %v1557 = vpop.f32.mrf.mxu0
    %v1558 = vadd.f32 %v1535, %v1557
    %1559 = vdwg.mxu0
    %v1560 = vadd.f32 %v1509, %v1512
    %v1561 = vrot.slane %v1560, 4
    %v1562 = vadd.f32 %v1560, %v1561
    %v1563 = vrot.slane %v1562, 2
    %v1564 = vadd.f32 %v1562, %v1563
    %v1565 = vrot.slane %v1564, 1
    %v1566 = vadd.f32 %v1564, %v1565
    %v1567 = vadd.f32 %v1555, %v1558
    %v1568 = vrot.slane %v1567, 4
    %v1569 = vadd.f32 %v1567, %v1568
    %v1570 = vrot.slane %v1569, 2
    %v1571 = vadd.f32 %v1569, %v1570
    %v1572 = vrot.slane %v1571, 1
    %v1573 = vadd.f32 %v1571, %v1572
    %v1574 = vmul.f32 %v1456, %v1456
    %v1575 = vmul.f32 %v1463, %v1463
    %v1576 = vsub.f32 %v1566, %v1574
    %v1577 = vsub.f32 %v1573, %v1575
    %v1578 = vadd.f32 %v1576, 1e-05
    %v1579 = vadd.f32 %v1577, 1e-05
    %v1580 = vrsqrt.pop %v1578
    %v1581 = vmul.f32 %v1580, %v1578
    %v1582 = vmul.f32 %v1581, %v1580
    %v1583 = vmul.f32 0.5, %v1582
    %v1584 = vsub.f32 1.5, %v1583
    %v1585 = vmul.f32 %v1580, %v1584
    %vm1586 = vweird.f32 %v1578
    %vm1587 = vweird.f32 %v1580
    %vm1588 = vmor %vm1586, %vm1587
    %v1589 = vsel %vm1588, %v1580, %v1585
    %v1590 = vrsqrt.pop %v1579
    %v1591 = vmul.f32 %v1590, %v1579
    %v1592 = vmul.f32 %v1591, %v1590
    %v1593 = vmul.f32 0.5, %v1592
    %v1594 = vsub.f32 1.5, %v1593
    %v1595 = vmul.f32 %v1590, %v1594
    %vm1596 = vweird.f32 %v1579
    %vm1597 = vweird.f32 %v1590
    %vm1598 = vmor %vm1596, %vm1597
    %v1599 = vsel %vm1598, %v1590, %v1595
    %v1600 = vsub.f32 %v775, %v1456
    %v1601 = vsub.f32 %v798, %v1463
    %v1602 = vsub.f32 %v778, %v1456
    %v1603 = vsub.f32 %v801, %v1463
    %v1604 = vmul.f32 %v1600, %v1589
    %v1605 = vmul.f32 %v1601, %v1599
    %v1606 = vmul.f32 %v1602, %v1589
    %v1607 = vmul.f32 %v1603, %v1599
    %v1609 = vperm.slane %v803, 0
    %v1610 = vperm.slane %v803, 1
    %v1613 = vmul.f32 %v1604, %v1609
    %v1614 = vmul.f32 %v1605, %v1610
    %v1615 = vmul.f32 %v1606, %v1609
    %v1616 = vmul.f32 %v1607, %v1610
    %v1618 = vperm.slane %v804, 0
    %v1619 = vperm.slane %v804, 1
    %v1622 = vadd.f32 %v1613, %v1618
    %v1623 = vadd.f32 %v1614, %v1619
    %v1624 = vadd.f32 %v1615, %v1618
    %v1625 = vadd.f32 %v1616, %v1619
    %v1626 = vmax.f32 %v1622, 0.0
    %v1627 = vmax.f32 %v1623, 0.0
    %v1628 = vmax.f32 %v1624, 0.0
    %v1629 = vmax.f32 %v1625, 0.0
    %1630 = vst [vmem:[#allocation5] sm:$0xff] %v1626
    %1631 = vst [vmem:[#allocation5 + $0x8] sm:$0xff] %v1627
    %1632 = vst [vmem:[#allocation5 + $0x10] sm:$0xff] %v1628
    %1633 = vst [vmem:[#allocation5 + $0x18] sm:$0xff] %v1629
    // Predicated region
    $region50: #{tpu_custom_call.1} parent=1 // pred_check
      _
    $region51: #{tpu_custom_call.1} parent=1 // pred_check_branch
      %1635 = sbr.rel (0) target = $region53
    $region52: #{tpu_custom_call.1} parent=1 // pred_region
      %1637 = vsyncadd [#allocation4], 0
      %s1638 = sshll.u32 [#allocation5], 4
      %s1639 = int_to_ptr.vmem [resolvable:$true] %s1638
      %s1640 = sshll.u32 %s11, 4
      %s1641 = int_to_ptr.hbm [resolvable:$true] %s1640
      %1646 = dma.vmem_to_hbm [thread:$0]  %s1639, 512, %s1641, [#allocation4], 256, 256, 16
    $region53: #{tpu_custom_call.1} parent=1 // pred_fallthru
      _
    // Predicated region
    $region54: #{tpu_custom_call.1} parent=1 // pred_check
      _
    $region55: #{tpu_custom_call.1} parent=1 // pred_check_branch
      %1648 = sbr.rel (0) target = $region57
    $region56: #{tpu_custom_call.1} parent=1 // pred_region
      %1650 = dma.done [#allocation4], 512
    $region57: #{tpu_custom_call.1} parent=1 // pred_fallthru
      _
    %1651 = vsyncpa [#allocation3], 1
    %1652 = vsyncpa [#allocation4], 1

</llo_original>
